<compile_context>
chip_gen: v5e
topology: v5e:2x2
jax: 0.10.0
libtpu: 0.0.40
codegen_flags: <defaults>
</compile_context>

<pallas_src>
import functools

import jax
import jax.numpy as jnp
from jax import lax
from jax.experimental import pallas as pl
from jax.experimental.pallas import tpu as pltpu


def pbcsa_kernel(xT_ref, avgP_ref, se_w1_ref, se_b1_ref, se_w2_ref, se_b2_ref,
                 sp_w1_ref, w2s_ref, w34s_ref,
                 out_ref, col_ref, *, N, H, W, C, Cr, dil):
    HW = H * W
    NHW = N * HW
    log2w = W.bit_length() - 1          # H, W are powers of two (asserted in wrapper)

    taps = [(kh * dil, kw * dil) for kh in (-1, 0, 1) for kw in (-1, 0, 1)]
    n_pairs = col_ref.shape[0] // (2 * Cr)          # taps padded 9 -> 10, stored in pairs

    def sigmoid_exp(v):
        # exp(sigmoid(v)); approx reciprocal rides the EUP slot (essentially free next
        # to the VPU/MXU work), ~1e-3 rel err — far inside the 5e-2 test tolerance.
        return jnp.exp(pl.reciprocal(1.0 + jnp.exp(-v), approx=True))

    # ---------------- spatial attention branch (sp_conv) ----------------
    # 1x1 conv C -> Cr (no bias):  (Cr, C) @ (C, NHW)   [f32: xT is shared w/ combine]
    t = jnp.dot(sp_w1_ref[...], xT_ref[...], preferred_element_type=jnp.float32)

    def im2col(v):
        # v: (Cr, NHW) f32.  Stage the 9 shifted+masked taps (plus a zero pad tap) into
        # the bf16 (10*Cr, NHW) scratch so each dilated 3x3 conv is a single K=10*Cr
        # matmul.  Taps are written in pairs -> every store covers a full 2*Cr-row bf16
        # sublane tile.  Validity masks are recomputed here at (Cr, NHW): the selects
        # need no sublane broadcast and nothing mask-related lives across the dots.
        pix = lax.broadcasted_iota(jnp.int32, (Cr, NHW), 1)
        wq = pix & (W - 1)
        hq = (pix >> log2w) & (H - 1)
        hv = {-dil: hq >= dil, 0: None, dil: hq < H - dil}   # vertical-tap validity
        wv = {-dil: wq >= dil, 0: None, dil: wq < W - dil}   # horizontal-tap validity

        def tap_val(tap):
            if tap >= len(taps):                             # zero pad tap (K 9*Cr -> 10*Cr)
                return jnp.zeros_like(v)
            sh, sw = taps[tap]
            off = sh * W + sw                                # flat tap offset
            shifted = v if off == 0 else pltpu.roll(v, shift=(-off) % NHW, axis=1)
            m = hv[sh]
            if wv[sw] is not None:
                m = wv[sw] if m is None else (m & wv[sw])
            return shifted if m is None else jnp.where(m, shifted, 0.0)

        for p in range(n_pairs):
            pair = jnp.concatenate([tap_val(2 * p), tap_val(2 * p + 1)], axis=0)
            col_ref[2 * p * Cr:2 * (p + 1) * Cr, :] = pair.astype(col_ref.dtype)
        return col_ref[...]

    # dilated 3x3 conv Cr -> Cr (bf16 operands, f32 acc):   (Cr, 10*Cr) @ (10*Cr, NHW)
    acc = jnp.dot(w2s_ref[...], im2col(t), preferred_element_type=jnp.float32)
    # dilated 3x3 conv folded with the final 1x1 Cr -> 1:   (1, 10*Cr) @ (10*Cr, NHW)
    y = jnp.dot(w34s_ref[...], im2col(acc), preferred_element_type=jnp.float32)

    # BatchNorm2d(1), training-mode batch stats.  Two-pass (centered) variance for
    # numerical safety; both reduction passes ride the MXU via the block-diag avg-pool
    # matrix (per-image means, then a trivial mean over the N lanes).
    mean = jnp.mean(jnp.dot(y, avgP_ref[...], preferred_element_type=jnp.float32))
    d = y - mean
    var = jnp.mean(jnp.dot(d * d, avgP_ref[...], preferred_element_type=jnp.float32))
    sp_gate = sigmoid_exp(d * lax.rsqrt(var + 1e-5))                 # (1, NHW)

    # ---------------- channel attention branch (se_block), batched over 2N ----------
    # AdaptiveAvgPool2d(1) as ONE matmul on the (otherwise idle) MXU:
    #   (C, NHW) @ block-diag(1/HW) (NHW, N) -> (C, N)
    avg_cols = jnp.dot(xT_ref[...], avgP_ref[...], preferred_element_type=jnp.float32)
    # AdaptiveMaxPool2d(1) has no matmul equivalent; stays on the XLU.
    max_cols = [jnp.max(xT_ref[:, n * HW:(n + 1) * HW], axis=1, keepdims=True)
                for n in range(N)]
    pooled = jnp.concatenate([avg_cols] + max_cols, axis=1)          # (C, 2N)

    h1 = jnp.dot(se_w1_ref[...], pooled,
                 preferred_element_type=jnp.float32) + se_b1_ref[...]
    h1 = jnp.where(h1 >= 0, h1, 0.15 * h1)                           # LeakyReLU(0.15)
    ch = jnp.dot(se_w2_ref[...], h1,
                 preferred_element_type=jnp.float32) + se_b2_ref[...]
    ch_gate = sigmoid_exp(ch[:, :N] + ch[:, N:])                     # (C, N)

    # ---------------- combine: out = x * (sp_gate + 1 + ch_gate)  (is_res=True) ------
    sp1 = sp_gate + 1.0                                              # hoisted once
    for n in range(N):
        lo, hi = n * HW, (n + 1) * HW            # lane offsets are multiples of 128
        out_ref[:, lo:hi] = xT_ref[:, lo:hi] * (sp1[:, lo:hi] + ch_gate[:, n:n + 1])


def pbcsa_block(x_nchw, params, *, reduct_ratio=4, dilation=4):
    N, C, H, W = x_nchw.shape
    assert (H & (H - 1)) == 0 and (W & (W - 1)) == 0, "H, W must be powers of two"
    Cr = C // reduct_ratio
    HW = H * W
    NHW = N * HW
    f32 = jnp.float32
    bf16 = jnp.bfloat16

    # Feature-major / pixels-on-lanes slab.
    xT = jnp.transpose(x_nchw, (1, 0, 2, 3)).reshape(C, NHW).astype(f32)

    # Block-diagonal avg-pool matrix avgP[n*HW + p, n] = 1/HW: lets the per-image
    # average pools AND the BN mean/var reductions run as matmuls on the MXU.
    # (Lane-skinny (NHW, N) pads to 128 lanes in VMEM, but it is tiny here.)
    avgP = jnp.repeat(jnp.eye(N, dtype=f32), HW, axis=0) * (1.0 / HW)   # (NHW, N)

    # Weight re-layouts for the transposed kernel (done once, outside the kernel).
    se_w1T = params["se_w1"].astype(f32).T                       # (Cr, C)
    se_b1c = params["se_b1"].astype(f32).reshape(Cr, 1)          # (Cr, 1)
    se_w2T = params["se_w2"].astype(f32).T                       # (C, Cr)
    se_b2c = params["se_b2"].astype(f32).reshape(C, 1)           # (C, 1)
    sp_w1T = params["sp_w1"].astype(f32).T                       # (Cr, C)
    # Stack the 9 taps along K (w2s[co, tap*Cr+ci] = sp_w2[tap, ci, co]), pad K with a
    # zero 10th tap so im2col stores are 2*Cr-row (bf16 sublane tile) aligned, and cast
    # the conv weights to bf16 (f32 accumulation in the kernel keeps accuracy).
    w2s = jnp.transpose(params["sp_w2"].astype(f32), (2, 0, 1)).reshape(Cr, 9 * Cr)
    w2s = jnp.pad(w2s, ((0, 0), (0, Cr))).astype(bf16)           # (Cr, 10*Cr)
    # Fold the trailing 1x1 (Cr -> 1) conv into the second 3x3 conv (exact: no
    # nonlinearity between them): w34[tap,ci] = sum_co sp_w3[tap,ci,co]*sp_w4[co,0].
    w34 = jnp.einsum("tio,oj->tij",
                     params["sp_w3"].astype(f32), params["sp_w4"].astype(f32))
    w34s = jnp.pad(w34.reshape(1, 9 * Cr), ((0, 0), (0, Cr))).astype(bf16)  # (1, 10*Cr)

    kernel = functools.partial(pbcsa_kernel, N=N, H=H, W=W, C=C, Cr=Cr, dil=dilation)
    outT = pl.pallas_call(
        kernel,
        out_shape=jax.ShapeDtypeStruct((C, NHW), f32),
        in_specs=[pl.BlockSpec(memory_space=pltpu.MemorySpace.VMEM)] * 9,
        out_specs=pl.BlockSpec(memory_space=pltpu.MemorySpace.VMEM),
        scratch_shapes=[pltpu.VMEM((10 * Cr, NHW), bf16)],
    )(xT, avgP, se_w1T, se_b1c, se_w2T, se_b2c, sp_w1T, w2s, w34s)

    return jnp.transpose(outT.reshape(C, N, H, W), (1, 0, 2, 3))


def init_params(key, C, Cr):
    # Deterministic synthetic init (shapes follow the PyTorch module __init__).
    ks = jax.random.split(key, 8)
    s = 0.2
    return {
        # se_block: Conv2d(C, Cr, 1) + bias ; LeakyReLU(0.15) ; Conv2d(Cr, C, 1) + bias
        "se_w1": s * jax.random.normal(ks[0], (C, Cr), jnp.float32),
        "se_b1": s * jax.random.normal(ks[1], (1, Cr), jnp.float32),
        "se_w2": s * jax.random.normal(ks[2], (Cr, C), jnp.float32),
        "se_b2": s * jax.random.normal(ks[3], (1, C), jnp.float32),
        # sp_conv: 1x1 C->Cr, 3x3 dilated Cr->Cr, 3x3 dilated Cr->Cr, 1x1 Cr->1 (no bias)
        "sp_w1": s * jax.random.normal(ks[4], (C, Cr), jnp.float32),
        "sp_w2": s * jax.random.normal(ks[5], (9, Cr, Cr), jnp.float32),  # taps (kh,kw) row-major
        "sp_w3": s * jax.random.normal(ks[6], (9, Cr, Cr), jnp.float32),
        "sp_w4": s * jax.random.normal(ks[7], (Cr, 1), jnp.float32),
    }


def pbcsa_reference(x, p, *, dilation=4):
    # Pure-JAX reference (NCHW in / NCHW out), mirrors the PyTorch forward.
    Cr = p["se_w1"].shape[1]

    def se(v):  # (N, C)
        h = v @ p["se_w1"] + p["se_b1"]
        h = jnp.where(h >= 0, h, 0.15 * h)
        return h @ p["se_w2"] + p["se_b2"]

    ch_att = se(x.mean(axis=(2, 3))) + se(x.max(axis=(2, 3)))
    ch_gate = jnp.exp(jax.nn.sigmoid(ch_att))[:, :, None, None]

    xhwc = jnp.transpose(x, (0, 2, 3, 1))
    t = xhwc @ p["sp_w1"]

    def dconv(t, wt):
        w = wt.reshape(3, 3, Cr, Cr)  # HWIO
        return lax.conv_general_dilated(
            t, w, window_strides=(1, 1),
            padding=[(dilation, dilation)] * 2,
            rhs_dilation=(dilation, dilation),
            dimension_numbers=("NHWC", "HWIO", "NHWC"))

    t = dconv(t, p["sp_w2"])
    t = dconv(t, p["sp_w3"])
    y = t @ p["sp_w4"]                                   # (N, H, W, 1)
    mean = y.mean()
    var = ((y - mean) ** 2).mean()
    y = (y - mean) / jnp.sqrt(var + 1e-5)
    sp_gate = jnp.transpose(jnp.exp(jax.nn.sigmoid(y)), (0, 3, 1, 2))  # (N,1,H,W)
    return x * sp_gate + x + x * ch_gate


if __name__ == "__main__":
    N, C, H, W = 2, 32, 16, 16
    reduct_ratio, dilation = 4, 4

    key = jax.random.PRNGKey(0)
    kx, kp = jax.random.split(key)
    x = jax.random.normal(kx, (N, C, H, W), jnp.float32)
    params = init_params(kp, C, C // reduct_ratio)

    out = pbcsa_block(x, params, reduct_ratio=reduct_ratio, dilation=dilation)
    out = jax.block_until_ready(out)

    ref = pbcsa_reference(x, params, dilation=dilation)
    assert out.shape == ref.shape == (N, C, H, W)
    max_err = float(jnp.max(jnp.abs(out - ref)))
    if not (max_err < 5e-2):
        raise AssertionError(f"kernel/reference mismatch: max abs err = {max_err}")

    print("KERNEL_OK")
</pallas_src>

<mosaic_0001>
module attributes {stable_mosaic.version = 11 : i64} {
  func.func @pbcsa_kernel(%arg0: memref<32x512xf32, #tpu.memory_space<vmem>>, %arg1: memref<512x2xf32, #tpu.memory_space<vmem>>, %arg2: memref<8x32xf32, #tpu.memory_space<vmem>>, %arg3: memref<8x1xf32, #tpu.memory_space<vmem>>, %arg4: memref<32x8xf32, #tpu.memory_space<vmem>>, %arg5: memref<32x1xf32, #tpu.memory_space<vmem>>, %arg6: memref<8x32xf32, #tpu.memory_space<vmem>>, %arg7: memref<8x80xbf16, #tpu.memory_space<vmem>>, %arg8: memref<1x80xbf16, #tpu.memory_space<vmem>>, %arg9: memref<32x512xf32, #tpu.memory_space<vmem>>, %arg10: memref<80x512xbf16, #tpu.memory_space<vmem>>) attributes {dimension_semantics = [], scalar_prefetch = 0 : i64, scratch_operands = 1 : i64, tpu.core_type = #tpu.core_type<tc>} {
    %c0 = arith.constant 0 : index
    %c0_0 = arith.constant 0 : index
    %0 = vector.load %arg6[%c0, %c0_0] : memref<8x32xf32, #tpu.memory_space<vmem>>, vector<8x32xf32>
    %c0_1 = arith.constant 0 : index
    %c0_2 = arith.constant 0 : index
    %1 = vector.load %arg0[%c0_1, %c0_2] : memref<32x512xf32, #tpu.memory_space<vmem>>, vector<32x512xf32>
    %cst = arith.constant dense<0.000000e+00> : vector<8x512xf32>
    %2 = tpu.matmul %0, %1, %cst {dimension_numbers = #tpu.dot_dimension_numbers<[1], [0], [0], [1], [0, 0, 1, 1], [], []>} : vector<8x32xf32>, vector<32x512xf32>, vector<8x512xf32> -> vector<8x512xf32>
    %c0_3 = arith.constant 0 : index
    %c0_4 = arith.constant 0 : index
    %3 = vector.load %arg7[%c0_3, %c0_4] : memref<8x80xbf16, #tpu.memory_space<vmem>>, vector<8x80xbf16>
    %4 = tpu.iota {dimensions = array<i32: 1>} : vector<8x512xi32>
    %c15_i32 = arith.constant 15 : i32
    %5 = vector.broadcast %c15_i32 : i32 to vector<8x512xi32>
    %6 = arith.andi %4, %5 : vector<8x512xi32>
    %c4_i32 = arith.constant 4 : i32
    %7 = vector.broadcast %c4_i32 : i32 to vector<8x512xi32>
    %8 = arith.shrsi %4, %7 : vector<8x512xi32>
    %c15_i32_5 = arith.constant 15 : i32
    %9 = vector.broadcast %c15_i32_5 : i32 to vector<8x512xi32>
    %10 = arith.andi %8, %9 : vector<8x512xi32>
    %c4_i32_6 = arith.constant 4 : i32
    %11 = vector.broadcast %c4_i32_6 : i32 to vector<8x512xi32>
    %12 = arith.cmpi sge, %10, %11 : vector<8x512xi32>
    %c12_i32 = arith.constant 12 : i32
    %13 = vector.broadcast %c12_i32 : i32 to vector<8x512xi32>
    %14 = arith.cmpi slt, %10, %13 : vector<8x512xi32>
    %c4_i32_7 = arith.constant 4 : i32
    %15 = vector.broadcast %c4_i32_7 : i32 to vector<8x512xi32>
    %16 = arith.cmpi sge, %6, %15 : vector<8x512xi32>
    %c12_i32_8 = arith.constant 12 : i32
    %17 = vector.broadcast %c12_i32_8 : i32 to vector<8x512xi32>
    %18 = arith.cmpi slt, %6, %17 : vector<8x512xi32>
    %c68_i32 = arith.constant 68 : i32
    %19 = tpu.dynamic_rotate %2 by %c68_i32 dim 1 : vector<8x512xf32>, i32 -> vector<8x512xf32>
    %20 = arith.andi %12, %16 : vector<8x512xi1>
    %cst_9 = arith.constant 0.000000e+00 : f32
    %21 = vector.broadcast %cst_9 : f32 to vector<8x512xf32>
    %22 = arith.select %20, %19, %21 : vector<8x512xi1>, vector<8x512xf32>
    %c64_i32 = arith.constant 64 : i32
    %23 = tpu.dynamic_rotate %2 by %c64_i32 dim 1 : vector<8x512xf32>, i32 -> vector<8x512xf32>
    %cst_10 = arith.constant 0.000000e+00 : f32
    %24 = vector.broadcast %cst_10 : f32 to vector<8x512xf32>
    %25 = arith.select %12, %23, %24 : vector<8x512xi1>, vector<8x512xf32>
    %26 = tpu.concatenate %22, %25 in 0 : vector<8x512xf32>, vector<8x512xf32> -> vector<16x512xf32>
    %27 = arith.truncf %26 : vector<16x512xf32> to vector<16x512xbf16>
    %c0_11 = arith.constant 0 : index
    %c0_12 = arith.constant 0 : index
    %28 = vector.load %arg10[%c0_11, %c0_12] : memref<80x512xbf16, #tpu.memory_space<vmem>>, vector<16x512xbf16>
    tpu.vector_store %arg10[%c0_11, %c0_12], %27 {strides = array<i32>} : memref<80x512xbf16, #tpu.memory_space<vmem>>, vector<16x512xbf16>,
    %c60_i32 = arith.constant 60 : i32
    %29 = tpu.dynamic_rotate %2 by %c60_i32 dim 1 : vector<8x512xf32>, i32 -> vector<8x512xf32>
    %30 = arith.andi %12, %18 : vector<8x512xi1>
    %cst_13 = arith.constant 0.000000e+00 : f32
    %31 = vector.broadcast %cst_13 : f32 to vector<8x512xf32>
    %32 = arith.select %30, %29, %31 : vector<8x512xi1>, vector<8x512xf32>
    %c4_i32_14 = arith.constant 4 : i32
    %33 = tpu.dynamic_rotate %2 by %c4_i32_14 dim 1 : vector<8x512xf32>, i32 -> vector<8x512xf32>
    %cst_15 = arith.constant 0.000000e+00 : f32
    %34 = vector.broadcast %cst_15 : f32 to vector<8x512xf32>
    %35 = arith.select %16, %33, %34 : vector<8x512xi1>, vector<8x512xf32>
    %36 = tpu.concatenate %32, %35 in 0 : vector<8x512xf32>, vector<8x512xf32> -> vector<16x512xf32>
    %37 = arith.truncf %36 : vector<16x512xf32> to vector<16x512xbf16>
    %c16 = arith.constant 16 : index
    %c0_16 = arith.constant 0 : index
    %38 = vector.load %arg10[%c16, %c0_16] : memref<80x512xbf16, #tpu.memory_space<vmem>>, vector<16x512xbf16>
    tpu.vector_store %arg10[%c16, %c0_16], %37 {strides = array<i32>} : memref<80x512xbf16, #tpu.memory_space<vmem>>, vector<16x512xbf16>,
    %c508_i32 = arith.constant 508 : i32
    %39 = tpu.dynamic_rotate %2 by %c508_i32 dim 1 : vector<8x512xf32>, i32 -> vector<8x512xf32>
    %cst_17 = arith.constant 0.000000e+00 : f32
    %40 = vector.broadcast %cst_17 : f32 to vector<8x512xf32>
    %41 = arith.select %18, %39, %40 : vector<8x512xi1>, vector<8x512xf32>
    %42 = tpu.concatenate %2, %41 in 0 : vector<8x512xf32>, vector<8x512xf32> -> vector<16x512xf32>
    %43 = arith.truncf %42 : vector<16x512xf32> to vector<16x512xbf16>
    %c32 = arith.constant 32 : index
    %c0_18 = arith.constant 0 : index
    %44 = vector.load %arg10[%c32, %c0_18] : memref<80x512xbf16, #tpu.memory_space<vmem>>, vector<16x512xbf16>
    tpu.vector_store %arg10[%c32, %c0_18], %43 {strides = array<i32>} : memref<80x512xbf16, #tpu.memory_space<vmem>>, vector<16x512xbf16>,
    %c452_i32 = arith.constant 452 : i32
    %45 = tpu.dynamic_rotate %2 by %c452_i32 dim 1 : vector<8x512xf32>, i32 -> vector<8x512xf32>
    %46 = arith.andi %14, %16 : vector<8x512xi1>
    %cst_19 = arith.constant 0.000000e+00 : f32
    %47 = vector.broadcast %cst_19 : f32 to vector<8x512xf32>
    %48 = arith.select %46, %45, %47 : vector<8x512xi1>, vector<8x512xf32>
    %c448_i32 = arith.constant 448 : i32
    %49 = tpu.dynamic_rotate %2 by %c448_i32 dim 1 : vector<8x512xf32>, i32 -> vector<8x512xf32>
    %cst_20 = arith.constant 0.000000e+00 : f32
    %50 = vector.broadcast %cst_20 : f32 to vector<8x512xf32>
    %51 = arith.select %14, %49, %50 : vector<8x512xi1>, vector<8x512xf32>
    %52 = tpu.concatenate %48, %51 in 0 : vector<8x512xf32>, vector<8x512xf32> -> vector<16x512xf32>
    %53 = arith.truncf %52 : vector<16x512xf32> to vector<16x512xbf16>
    %c48 = arith.constant 48 : index
    %c0_21 = arith.constant 0 : index
    %54 = vector.load %arg10[%c48, %c0_21] : memref<80x512xbf16, #tpu.memory_space<vmem>>, vector<16x512xbf16>
    tpu.vector_store %arg10[%c48, %c0_21], %53 {strides = array<i32>} : memref<80x512xbf16, #tpu.memory_space<vmem>>, vector<16x512xbf16>,
    %c444_i32 = arith.constant 444 : i32
    %55 = tpu.dynamic_rotate %2 by %c444_i32 dim 1 : vector<8x512xf32>, i32 -> vector<8x512xf32>
    %56 = arith.andi %14, %18 : vector<8x512xi1>
    %cst_22 = arith.constant 0.000000e+00 : f32
    %57 = vector.broadcast %cst_22 : f32 to vector<8x512xf32>
    %58 = arith.select %56, %55, %57 : vector<8x512xi1>, vector<8x512xf32>
    %cst_23 = arith.constant 0.000000e+00 : f32
    %59 = vector.broadcast %cst_23 : f32 to vector<8x512xf32>
    %60 = tpu.concatenate %58, %59 in 0 : vector<8x512xf32>, vector<8x512xf32> -> vector<16x512xf32>
    %61 = arith.truncf %60 : vector<16x512xf32> to vector<16x512xbf16>
    %c64 = arith.constant 64 : index
    %c0_24 = arith.constant 0 : index
    %62 = vector.load %arg10[%c64, %c0_24] : memref<80x512xbf16, #tpu.memory_space<vmem>>, vector<16x512xbf16>
    tpu.vector_store %arg10[%c64, %c0_24], %61 {strides = array<i32>} : memref<80x512xbf16, #tpu.memory_space<vmem>>, vector<16x512xbf16>,
    %c0_25 = arith.constant 0 : index
    %c0_26 = arith.constant 0 : index
    %63 = vector.load %arg10[%c0_25, %c0_26] : memref<80x512xbf16, #tpu.memory_space<vmem>>, vector<80x512xbf16>
    %cst_27 = arith.constant dense<0.000000e+00> : vector<8x512xf32>
    %64 = tpu.matmul %3, %63, %cst_27 {dimension_numbers = #tpu.dot_dimension_numbers<[1], [0], [0], [1], [0, 0, 1, 1], [], []>} : vector<8x80xbf16>, vector<80x512xbf16>, vector<8x512xf32> -> vector<8x512xf32>
    %c0_28 = arith.constant 0 : index
    %c0_29 = arith.constant 0 : index
    %65 = vector.load %arg8[%c0_28, %c0_29] : memref<1x80xbf16, #tpu.memory_space<vmem>>, vector<1x80xbf16>
    %66 = tpu.iota {dimensions = array<i32: 1>} : vector<8x512xi32>
    %c15_i32_30 = arith.constant 15 : i32
    %67 = vector.broadcast %c15_i32_30 : i32 to vector<8x512xi32>
    %68 = arith.andi %66, %67 : vector<8x512xi32>
    %c4_i32_31 = arith.constant 4 : i32
    %69 = vector.broadcast %c4_i32_31 : i32 to vector<8x512xi32>
    %70 = arith.shrsi %66, %69 : vector<8x512xi32>
    %c15_i32_32 = arith.constant 15 : i32
    %71 = vector.broadcast %c15_i32_32 : i32 to vector<8x512xi32>
    %72 = arith.andi %70, %71 : vector<8x512xi32>
    %c4_i32_33 = arith.constant 4 : i32
    %73 = vector.broadcast %c4_i32_33 : i32 to vector<8x512xi32>
    %74 = arith.cmpi sge, %72, %73 : vector<8x512xi32>
    %c12_i32_34 = arith.constant 12 : i32
    %75 = vector.broadcast %c12_i32_34 : i32 to vector<8x512xi32>
    %76 = arith.cmpi slt, %72, %75 : vector<8x512xi32>
    %c4_i32_35 = arith.constant 4 : i32
    %77 = vector.broadcast %c4_i32_35 : i32 to vector<8x512xi32>
    %78 = arith.cmpi sge, %68, %77 : vector<8x512xi32>
    %c12_i32_36 = arith.constant 12 : i32
    %79 = vector.broadcast %c12_i32_36 : i32 to vector<8x512xi32>
    %80 = arith.cmpi slt, %68, %79 : vector<8x512xi32>
    %c68_i32_37 = arith.constant 68 : i32
    %81 = tpu.dynamic_rotate %64 by %c68_i32_37 dim 1 : vector<8x512xf32>, i32 -> vector<8x512xf32>
    %82 = arith.andi %74, %78 : vector<8x512xi1>
    %cst_38 = arith.constant 0.000000e+00 : f32
    %83 = vector.broadcast %cst_38 : f32 to vector<8x512xf32>
    %84 = arith.select %82, %81, %83 : vector<8x512xi1>, vector<8x512xf32>
    %c64_i32_39 = arith.constant 64 : i32
    %85 = tpu.dynamic_rotate %64 by %c64_i32_39 dim 1 : vector<8x512xf32>, i32 -> vector<8x512xf32>
    %cst_40 = arith.constant 0.000000e+00 : f32
    %86 = vector.broadcast %cst_40 : f32 to vector<8x512xf32>
    %87 = arith.select %74, %85, %86 : vector<8x512xi1>, vector<8x512xf32>
    %88 = tpu.concatenate %84, %87 in 0 : vector<8x512xf32>, vector<8x512xf32> -> vector<16x512xf32>
    %89 = arith.truncf %88 : vector<16x512xf32> to vector<16x512xbf16>
    %c0_41 = arith.constant 0 : index
    %c0_42 = arith.constant 0 : index
    %90 = vector.load %arg10[%c0_41, %c0_42] : memref<80x512xbf16, #tpu.memory_space<vmem>>, vector<16x512xbf16>
    tpu.vector_store %arg10[%c0_41, %c0_42], %89 {strides = array<i32>} : memref<80x512xbf16, #tpu.memory_space<vmem>>, vector<16x512xbf16>,
    %c60_i32_43 = arith.constant 60 : i32
    %91 = tpu.dynamic_rotate %64 by %c60_i32_43 dim 1 : vector<8x512xf32>, i32 -> vector<8x512xf32>
    %92 = arith.andi %74, %80 : vector<8x512xi1>
    %cst_44 = arith.constant 0.000000e+00 : f32
    %93 = vector.broadcast %cst_44 : f32 to vector<8x512xf32>
    %94 = arith.select %92, %91, %93 : vector<8x512xi1>, vector<8x512xf32>
    %c4_i32_45 = arith.constant 4 : i32
    %95 = tpu.dynamic_rotate %64 by %c4_i32_45 dim 1 : vector<8x512xf32>, i32 -> vector<8x512xf32>
    %cst_46 = arith.constant 0.000000e+00 : f32
    %96 = vector.broadcast %cst_46 : f32 to vector<8x512xf32>
    %97 = arith.select %78, %95, %96 : vector<8x512xi1>, vector<8x512xf32>
    %98 = tpu.concatenate %94, %97 in 0 : vector<8x512xf32>, vector<8x512xf32> -> vector<16x512xf32>
    %99 = arith.truncf %98 : vector<16x512xf32> to vector<16x512xbf16>
    %c16_47 = arith.constant 16 : index
    %c0_48 = arith.constant 0 : index
    %100 = vector.load %arg10[%c16_47, %c0_48] : memref<80x512xbf16, #tpu.memory_space<vmem>>, vector<16x512xbf16>
    tpu.vector_store %arg10[%c16_47, %c0_48], %99 {strides = array<i32>} : memref<80x512xbf16, #tpu.memory_space<vmem>>, vector<16x512xbf16>,
    %c508_i32_49 = arith.constant 508 : i32
    %101 = tpu.dynamic_rotate %64 by %c508_i32_49 dim 1 : vector<8x512xf32>, i32 -> vector<8x512xf32>
    %cst_50 = arith.constant 0.000000e+00 : f32
    %102 = vector.broadcast %cst_50 : f32 to vector<8x512xf32>
    %103 = arith.select %80, %101, %102 : vector<8x512xi1>, vector<8x512xf32>
    %104 = tpu.concatenate %64, %103 in 0 : vector<8x512xf32>, vector<8x512xf32> -> vector<16x512xf32>
    %105 = arith.truncf %104 : vector<16x512xf32> to vector<16x512xbf16>
    %c32_51 = arith.constant 32 : index
    %c0_52 = arith.constant 0 : index
    %106 = vector.load %arg10[%c32_51, %c0_52] : memref<80x512xbf16, #tpu.memory_space<vmem>>, vector<16x512xbf16>
    tpu.vector_store %arg10[%c32_51, %c0_52], %105 {strides = array<i32>} : memref<80x512xbf16, #tpu.memory_space<vmem>>, vector<16x512xbf16>,
    %c452_i32_53 = arith.constant 452 : i32
    %107 = tpu.dynamic_rotate %64 by %c452_i32_53 dim 1 : vector<8x512xf32>, i32 -> vector<8x512xf32>
    %108 = arith.andi %76, %78 : vector<8x512xi1>
    %cst_54 = arith.constant 0.000000e+00 : f32
    %109 = vector.broadcast %cst_54 : f32 to vector<8x512xf32>
    %110 = arith.select %108, %107, %109 : vector<8x512xi1>, vector<8x512xf32>
    %c448_i32_55 = arith.constant 448 : i32
    %111 = tpu.dynamic_rotate %64 by %c448_i32_55 dim 1 : vector<8x512xf32>, i32 -> vector<8x512xf32>
    %cst_56 = arith.constant 0.000000e+00 : f32
    %112 = vector.broadcast %cst_56 : f32 to vector<8x512xf32>
    %113 = arith.select %76, %111, %112 : vector<8x512xi1>, vector<8x512xf32>
    %114 = tpu.concatenate %110, %113 in 0 : vector<8x512xf32>, vector<8x512xf32> -> vector<16x512xf32>
    %115 = arith.truncf %114 : vector<16x512xf32> to vector<16x512xbf16>
    %c48_57 = arith.constant 48 : index
    %c0_58 = arith.constant 0 : index
    %116 = vector.load %arg10[%c48_57, %c0_58] : memref<80x512xbf16, #tpu.memory_space<vmem>>, vector<16x512xbf16>
    tpu.vector_store %arg10[%c48_57, %c0_58], %115 {strides = array<i32>} : memref<80x512xbf16, #tpu.memory_space<vmem>>, vector<16x512xbf16>,
    %c444_i32_59 = arith.constant 444 : i32
    %117 = tpu.dynamic_rotate %64 by %c444_i32_59 dim 1 : vector<8x512xf32>, i32 -> vector<8x512xf32>
    %118 = arith.andi %76, %80 : vector<8x512xi1>
    %cst_60 = arith.constant 0.000000e+00 : f32
    %119 = vector.broadcast %cst_60 : f32 to vector<8x512xf32>
    %120 = arith.select %118, %117, %119 : vector<8x512xi1>, vector<8x512xf32>
    %cst_61 = arith.constant 0.000000e+00 : f32
    %121 = vector.broadcast %cst_61 : f32 to vector<8x512xf32>
    %122 = tpu.concatenate %120, %121 in 0 : vector<8x512xf32>, vector<8x512xf32> -> vector<16x512xf32>
    %123 = arith.truncf %122 : vector<16x512xf32> to vector<16x512xbf16>
    %c64_62 = arith.constant 64 : index
    %c0_63 = arith.constant 0 : index
    %124 = vector.load %arg10[%c64_62, %c0_63] : memref<80x512xbf16, #tpu.memory_space<vmem>>, vector<16x512xbf16>
    tpu.vector_store %arg10[%c64_62, %c0_63], %123 {strides = array<i32>} : memref<80x512xbf16, #tpu.memory_space<vmem>>, vector<16x512xbf16>,
    %c0_64 = arith.constant 0 : index
    %c0_65 = arith.constant 0 : index
    %125 = vector.load %arg10[%c0_64, %c0_65] : memref<80x512xbf16, #tpu.memory_space<vmem>>, vector<80x512xbf16>
    %cst_66 = arith.constant dense<0.000000e+00> : vector<1x512xf32>
    %126 = tpu.matmul %65, %125, %cst_66 {dimension_numbers = #tpu.dot_dimension_numbers<[1], [0], [0], [1], [0, 0, 1, 1], [], []>} : vector<1x80xbf16>, vector<80x512xbf16>, vector<1x512xf32> -> vector<1x512xf32>
    %c0_67 = arith.constant 0 : index
    %c0_68 = arith.constant 0 : index
    %127 = vector.load %arg1[%c0_67, %c0_68] : memref<512x2xf32, #tpu.memory_space<vmem>>, vector<512x2xf32>
    %cst_69 = arith.constant dense<0.000000e+00> : vector<1x2xf32>
    %128 = tpu.matmul %126, %127, %cst_69 {dimension_numbers = #tpu.dot_dimension_numbers<[1], [0], [0], [1], [0, 0, 1, 1], [], []>} : vector<1x512xf32>, vector<512x2xf32>, vector<1x2xf32> -> vector<1x2xf32>
    %129 = vector.shape_cast %128 : vector<1x2xf32> to vector<1x1x2xf32>
    %cst_70 = arith.constant dense<0.000000e+00> : vector<1xf32>
    %130 = vector.multi_reduction <add>, %129, %cst_70 [1, 2] : vector<1x1x2xf32> to vector<1xf32>
    %131 = vector.shape_cast %130 : vector<1xf32> to vector<1x1x1xf32>
    %132 = vector.extract %131[0, 0, 0] : f32 from vector<1x1x1xf32>
    %cst_71 = arith.constant 2.000000e+00 : f32
    %133 = arith.divf %132, %cst_71 : f32
    %134 = vector.broadcast %133 : f32 to vector<1x512xf32>
    %135 = arith.subf %126, %134 : vector<1x512xf32>
    %136 = arith.mulf %135, %135 : vector<1x512xf32>
    %c0_72 = arith.constant 0 : index
    %c0_73 = arith.constant 0 : index
    %137 = vector.load %arg1[%c0_72, %c0_73] : memref<512x2xf32, #tpu.memory_space<vmem>>, vector<512x2xf32>
    %cst_74 = arith.constant dense<0.000000e+00> : vector<1x2xf32>
    %138 = tpu.matmul %136, %137, %cst_74 {dimension_numbers = #tpu.dot_dimension_numbers<[1], [0], [0], [1], [0, 0, 1, 1], [], []>} : vector<1x512xf32>, vector<512x2xf32>, vector<1x2xf32> -> vector<1x2xf32>
    %139 = vector.shape_cast %138 : vector<1x2xf32> to vector<1x1x2xf32>
    %cst_75 = arith.constant dense<0.000000e+00> : vector<1xf32>
    %140 = vector.multi_reduction <add>, %139, %cst_75 [1, 2] : vector<1x1x2xf32> to vector<1xf32>
    %141 = vector.shape_cast %140 : vector<1xf32> to vector<1x1x1xf32>
    %142 = vector.extract %141[0, 0, 0] : f32 from vector<1x1x1xf32>
    %cst_76 = arith.constant 2.000000e+00 : f32
    %143 = arith.divf %142, %cst_76 : f32
    %cst_77 = arith.constant 9.99999974E-6 : f32
    %144 = arith.addf %143, %cst_77 : f32
    %145 = math.rsqrt %144 : f32
    %146 = vector.broadcast %145 : f32 to vector<1x512xf32>
    %147 = arith.mulf %135, %146 : vector<1x512xf32>
    %cst_78 = arith.constant 0.000000e+00 : f32
    %148 = vector.broadcast %cst_78 : f32 to vector<1x512xf32>
    %149 = arith.subf %148, %147 : vector<1x512xf32>
    %150 = math.exp %149 : vector<1x512xf32>
    %cst_79 = arith.constant 1.000000e+00 : f32
    %151 = vector.broadcast %cst_79 : f32 to vector<1x512xf32>
    %152 = arith.addf %151, %150 : vector<1x512xf32>
    %153 = tpu.reciprocal %152 {approx = true} : vector<1x512xf32> -> vector<1x512xf32>
    %154 = math.exp %153 : vector<1x512xf32>
    %c0_80 = arith.constant 0 : index
    %c0_81 = arith.constant 0 : index
    %155 = vector.load %arg0[%c0_80, %c0_81] : memref<32x512xf32, #tpu.memory_space<vmem>>, vector<32x512xf32>
    %c0_82 = arith.constant 0 : index
    %c0_83 = arith.constant 0 : index
    %156 = vector.load %arg1[%c0_82, %c0_83] : memref<512x2xf32, #tpu.memory_space<vmem>>, vector<512x2xf32>
    %cst_84 = arith.constant dense<0.000000e+00> : vector<32x2xf32>
    %157 = tpu.matmul %155, %156, %cst_84 {dimension_numbers = #tpu.dot_dimension_numbers<[1], [0], [0], [1], [0, 0, 1, 1], [], []>} : vector<32x512xf32>, vector<512x2xf32>, vector<32x2xf32> -> vector<32x2xf32>
    %c0_85 = arith.constant 0 : index
    %c0_86 = arith.constant 0 : index
    %158 = vector.load %arg0[%c0_85, %c0_86] : memref<32x512xf32, #tpu.memory_space<vmem>>, vector<32x256xf32>
    %cst_87 = arith.constant dense<0xFF800000> : vector<32xf32>
    %159 = vector.multi_reduction <maximumf>, %158, %cst_87 [1] : vector<32x256xf32> to vector<32xf32>
    %160 = vector.shape_cast %159 : vector<32xf32> to vector<32x1xf32>
    %c0_88 = arith.constant 0 : index
    %c256 = arith.constant 256 : index
    %161 = vector.load %arg0[%c0_88, %c256] : memref<32x512xf32, #tpu.memory_space<vmem>>, vector<32x256xf32>
    %cst_89 = arith.constant dense<0xFF800000> : vector<32xf32>
    %162 = vector.multi_reduction <maximumf>, %161, %cst_89 [1] : vector<32x256xf32> to vector<32xf32>
    %163 = vector.shape_cast %162 : vector<32xf32> to vector<32x1xf32>
    %164 = tpu.concatenate %157, %160, %163 in 1 : vector<32x2xf32>, vector<32x1xf32>, vector<32x1xf32> -> vector<32x4xf32>
    %c0_90 = arith.constant 0 : index
    %c0_91 = arith.constant 0 : index
    %165 = vector.load %arg2[%c0_90, %c0_91] : memref<8x32xf32, #tpu.memory_space<vmem>>, vector<8x32xf32>
    %cst_92 = arith.constant dense<0.000000e+00> : vector<8x4xf32>
    %166 = tpu.matmul %165, %164, %cst_92 {dimension_numbers = #tpu.dot_dimension_numbers<[1], [0], [0], [1], [0, 0, 1, 1], [], []>} : vector<8x32xf32>, vector<32x4xf32>, vector<8x4xf32> -> vector<8x4xf32>
    %c0_93 = arith.constant 0 : index
    %c0_94 = arith.constant 0 : index
    %167 = vector.load %arg3[%c0_93, %c0_94] : memref<8x1xf32, #tpu.memory_space<vmem>>, vector<8x1xf32>
    %168 = vector.broadcast %167 : vector<8x1xf32> to vector<8x4xf32>
    %169 = arith.addf %166, %168 : vector<8x4xf32>
    %cst_95 = arith.constant 0.000000e+00 : f32
    %170 = vector.broadcast %cst_95 : f32 to vector<8x4xf32>
    %171 = arith.cmpf oge, %169, %170 : vector<8x4xf32>
    %cst_96 = arith.constant 1.500000e-01 : f32
    %172 = vector.broadcast %cst_96 : f32 to vector<8x4xf32>
    %173 = arith.mulf %172, %169 : vector<8x4xf32>
    %174 = arith.select %171, %169, %173 : vector<8x4xi1>, vector<8x4xf32>
    %c0_97 = arith.constant 0 : index
    %c0_98 = arith.constant 0 : index
    %175 = vector.load %arg4[%c0_97, %c0_98] : memref<32x8xf32, #tpu.memory_space<vmem>>, vector<32x8xf32>
    %cst_99 = arith.constant dense<0.000000e+00> : vector<32x4xf32>
    %176 = tpu.matmul %175, %174, %cst_99 {dimension_numbers = #tpu.dot_dimension_numbers<[1], [0], [0], [1], [0, 0, 1, 1], [], []>} : vector<32x8xf32>, vector<8x4xf32>, vector<32x4xf32> -> vector<32x4xf32>
    %c0_100 = arith.constant 0 : index
    %c0_101 = arith.constant 0 : index
    %177 = vector.load %arg5[%c0_100, %c0_101] : memref<32x1xf32, #tpu.memory_space<vmem>>, vector<32x1xf32>
    %178 = vector.broadcast %177 : vector<32x1xf32> to vector<32x4xf32>
    %179 = arith.addf %176, %178 : vector<32x4xf32>
    %180 = vector.extract_strided_slice %179 {offsets = [0, 0], sizes = [32, 2], strides = [1, 1]} : vector<32x4xf32> to vector<32x2xf32>
    %181 = vector.extract_strided_slice %179 {offsets = [0, 2], sizes = [32, 2], strides = [1, 1]} : vector<32x4xf32> to vector<32x2xf32>
    %182 = arith.addf %180, %181 : vector<32x2xf32>
    %cst_102 = arith.constant 0.000000e+00 : f32
    %183 = vector.broadcast %cst_102 : f32 to vector<32x2xf32>
    %184 = arith.subf %183, %182 : vector<32x2xf32>
    %185 = math.exp %184 : vector<32x2xf32>
    %cst_103 = arith.constant 1.000000e+00 : f32
    %186 = vector.broadcast %cst_103 : f32 to vector<32x2xf32>
    %187 = arith.addf %186, %185 : vector<32x2xf32>
    %188 = tpu.reciprocal %187 {approx = true} : vector<32x2xf32> -> vector<32x2xf32>
    %189 = math.exp %188 : vector<32x2xf32>
    %cst_104 = arith.constant 1.000000e+00 : f32
    %190 = vector.broadcast %cst_104 : f32 to vector<1x512xf32>
    %191 = arith.addf %154, %190 : vector<1x512xf32>
    %c0_105 = arith.constant 0 : index
    %c0_106 = arith.constant 0 : index
    %192 = vector.load %arg0[%c0_105, %c0_106] : memref<32x512xf32, #tpu.memory_space<vmem>>, vector<32x256xf32>
    %193 = vector.extract_strided_slice %191 {offsets = [0, 0], sizes = [1, 256], strides = [1, 1]} : vector<1x512xf32> to vector<1x256xf32>
    %194 = vector.extract_strided_slice %189 {offsets = [0, 0], sizes = [32, 1], strides = [1, 1]} : vector<32x2xf32> to vector<32x1xf32>
    %195 = vector.broadcast %193 : vector<1x256xf32> to vector<32x256xf32>
    %196 = vector.broadcast %194 : vector<32x1xf32> to vector<32x256xf32>
    %197 = arith.addf %195, %196 : vector<32x256xf32>
    %198 = arith.mulf %192, %197 : vector<32x256xf32>
    %c0_107 = arith.constant 0 : index
    %c0_108 = arith.constant 0 : index
    %199 = vector.load %arg9[%c0_107, %c0_108] : memref<32x512xf32, #tpu.memory_space<vmem>>, vector<32x256xf32>
    tpu.vector_store %arg9[%c0_107, %c0_108], %198 {strides = array<i32>} : memref<32x512xf32, #tpu.memory_space<vmem>>, vector<32x256xf32>,
    %c0_109 = arith.constant 0 : index
    %c256_110 = arith.constant 256 : index
    %200 = vector.load %arg0[%c0_109, %c256_110] : memref<32x512xf32, #tpu.memory_space<vmem>>, vector<32x256xf32>
    %201 = vector.extract_strided_slice %191 {offsets = [0, 256], sizes = [1, 256], strides = [1, 1]} : vector<1x512xf32> to vector<1x256xf32>
    %202 = vector.extract_strided_slice %189 {offsets = [0, 1], sizes = [32, 1], strides = [1, 1]} : vector<32x2xf32> to vector<32x1xf32>
    %203 = vector.broadcast %201 : vector<1x256xf32> to vector<32x256xf32>
    %204 = vector.broadcast %202 : vector<32x1xf32> to vector<32x256xf32>
    %205 = arith.addf %203, %204 : vector<32x256xf32>
    %206 = arith.mulf %200, %205 : vector<32x256xf32>
    %c0_111 = arith.constant 0 : index
    %c256_112 = arith.constant 256 : index
    %207 = vector.load %arg9[%c0_111, %c256_112] : memref<32x512xf32, #tpu.memory_space<vmem>>, vector<32x256xf32>
    tpu.vector_store %arg9[%c0_111, %c256_112], %206 {strides = array<i32>} : memref<32x512xf32, #tpu.memory_space<vmem>>, vector<32x256xf32>,
    return
  }
}

</mosaic_0001>

<llo_original>
// kernel: tpu_custom_call.1
$region0: #{tpu_custom_call.1}
  #allocation0 [shape = 'u32[]', space=smem, size = 0x4, offset = 0x4, fixed_abs, tag = 'smem constant byte address 0x4 - core index']
  #allocation1 [shape = 'u32[72,128]{1,0:T(1,128)}', space=vmem, size = 0x9000, scoped, tag = 'internal scratch']
  #allocation2 [shape = 'bf16[80,512]{1,0:T(8,128)(2,1)}', space=vmem, size = 0x14000, scoped, tag = 'scratch operand']
  %s0 = inlined_call_operand.vmem [shape: f32[32,512], index: 0, kind: input, shape index: {}]
  %s1 = inlined_call_operand.vmem [shape: f32[512,2], index: 1, kind: input, shape index: {}]
  %s2 = inlined_call_operand.vmem [shape: f32[8,32], index: 2, kind: input, shape index: {}]
  %s3 = inlined_call_operand.vmem [shape: f32[8,1], index: 3, kind: input, shape index: {}]
  %s4 = inlined_call_operand.vmem [shape: f32[32,8], index: 4, kind: input, shape index: {}]
  %s5 = inlined_call_operand.vmem [shape: f32[32,1], index: 5, kind: input, shape index: {}]
  %s6 = inlined_call_operand.vmem [shape: f32[8,32], index: 6, kind: input, shape index: {}]
  %s7 = inlined_call_operand.vmem [shape: bf16[8,80], index: 7, kind: input, shape index: {}]
  %s8 = inlined_call_operand.vmem [shape: bf16[1,80], index: 8, kind: input, shape index: {}]
  %s9 = inlined_call_operand.hbm [shape: f32[32,512], index: 9, kind: output, shape index: {}]
  %s10 = sld [smem:[#allocation0]]
  $region46: #{tpu_custom_call.1} parent=0
    _
  %s12 = ssub.s32 1, %s10
  %s13 = scalar_select 0, %s12, %s10
  $region1: #{tpu_custom_call.1} parent=0
    #allocation3 [shape = 'u8[65536]{0}', space=vmem, size = 0x10000, scoped, tag = 'output window, operand 0, single buffered']
    #allocation4 [shape = 's32[1]{0}', space=sflag, size = 0x4, scoped, tag = 'scoped memory for tpu_custom_call.1']
    %14 = vsyncpa [#allocation4], 0
    // Predicated region
    $region2: #{tpu_custom_call.1} parent=1 // pred_check
      _
    $region3: #{tpu_custom_call.1} parent=1 // pred_check_branch
      %16 = sbr.rel (0) target = $region5
    $region4: #{tpu_custom_call.1} parent=1 // pred_region
      _
    $region5: #{tpu_custom_call.1} parent=1 // pred_fallthru
      _
    // Predicated region
    $region6: #{tpu_custom_call.1} parent=1 // pred_check
      _
    $region7: #{tpu_custom_call.1} parent=1 // pred_check_branch
      %18 = sbr.rel (0) target = $region9
    $region8: #{tpu_custom_call.1} parent=1 // pred_region
      _
    $region9: #{tpu_custom_call.1} parent=1 // pred_fallthru
      _
    // Predicated region
    $region10: #{tpu_custom_call.1} parent=1 // pred_check
      _
    $region11: #{tpu_custom_call.1} parent=1 // pred_check_branch
      %20 = sbr.rel (0) target = $region13
    $region12: #{tpu_custom_call.1} parent=1 // pred_region
      _
    $region13: #{tpu_custom_call.1} parent=1 // pred_fallthru
      _
    // Predicated region
    $region14: #{tpu_custom_call.1} parent=1 // pred_check
      _
    $region15: #{tpu_custom_call.1} parent=1 // pred_check_branch
      %22 = sbr.rel (0) target = $region17
    $region16: #{tpu_custom_call.1} parent=1 // pred_region
      _
    $region17: #{tpu_custom_call.1} parent=1 // pred_fallthru
      _
    // Predicated region
    $region18: #{tpu_custom_call.1} parent=1 // pred_check
      _
    $region19: #{tpu_custom_call.1} parent=1 // pred_check_branch
      %24 = sbr.rel (0) target = $region21
    $region20: #{tpu_custom_call.1} parent=1 // pred_region
      _
    $region21: #{tpu_custom_call.1} parent=1 // pred_fallthru
      _
    // Predicated region
    $region22: #{tpu_custom_call.1} parent=1 // pred_check
      _
    $region23: #{tpu_custom_call.1} parent=1 // pred_check_branch
      %26 = sbr.rel (0) target = $region25
    $region24: #{tpu_custom_call.1} parent=1 // pred_region
      _
    $region25: #{tpu_custom_call.1} parent=1 // pred_fallthru
      _
    // Predicated region
    $region26: #{tpu_custom_call.1} parent=1 // pred_check
      _
    $region27: #{tpu_custom_call.1} parent=1 // pred_check_branch
      %28 = sbr.rel (0) target = $region29
    $region28: #{tpu_custom_call.1} parent=1 // pred_region
      _
    $region29: #{tpu_custom_call.1} parent=1 // pred_fallthru
      _
    // Predicated region
    $region30: #{tpu_custom_call.1} parent=1 // pred_check
      _
    $region31: #{tpu_custom_call.1} parent=1 // pred_check_branch
      %30 = sbr.rel (0) target = $region33
    $region32: #{tpu_custom_call.1} parent=1 // pred_region
      _
    $region33: #{tpu_custom_call.1} parent=1 // pred_fallthru
      _
    // Predicated region
    $region34: #{tpu_custom_call.1} parent=1 // pred_check
      _
    $region35: #{tpu_custom_call.1} parent=1 // pred_check_branch
      %32 = sbr.rel (0) target = $region37
    $region36: #{tpu_custom_call.1} parent=1 // pred_region
      _
    $region37: #{tpu_custom_call.1} parent=1 // pred_fallthru
      _
    %v34 = vld [vmem:[%s6] sm:$0xff]
    %v35 = vld [vmem:[%s0] sm:$0xff]
    %v36 = vld [vmem:[%s0 + $0x8] sm:$0xff]
    %v37 = vld [vmem:[%s0 + $0x10] sm:$0xff]
    %v38 = vld [vmem:[%s0 + $0x18] sm:$0xff]
    %v39 = vld [vmem:[%s0 + $0x20] sm:$0xff]
    %v40 = vld [vmem:[%s0 + $0x28] sm:$0xff]
    %v41 = vld [vmem:[%s0 + $0x30] sm:$0xff]
    %v42 = vld [vmem:[%s0 + $0x38] sm:$0xff]
    %v43 = vld [vmem:[%s0 + $0x40] sm:$0xff]
    %v44 = vld [vmem:[%s0 + $0x48] sm:$0xff]
    %v45 = vld [vmem:[%s0 + $0x50] sm:$0xff]
    %v46 = vld [vmem:[%s0 + $0x58] sm:$0xff]
    %v47 = vld [vmem:[%s0 + $0x60] sm:$0xff]
    %v48 = vld [vmem:[%s0 + $0x68] sm:$0xff]
    %v49 = vld [vmem:[%s0 + $0x70] sm:$0xff]
    %v50 = vld [vmem:[%s0 + $0x78] sm:$0xff]
    %vm51 = vcmask 261120
    %v53 = vsel %vm51, %v34, 0
    %55 = vmatpush.msra.mxu0 0.0
    %56 = vmatpush.msra.mxu0 0.0
    %57 = vmatpush.msra.mxu0 0.0
    %58 = vmatpush.msra.mxu0 0.0
    %59 = vmatpush.msra.mxu0 0.0
    %60 = vmatpush.msra.mxu0 0.0
    %61 = vmatpush.msra.mxu0 0.0
    %62 = vmatpush.msra.mxu0 0.0
    %63 = vmatpush.msra.mxu0 0.0
    %64 = vmatpush.msra.mxu0 0.0
    %65 = vmatpush.msra.mxu0 0.0
    %66 = vmatpush.msra.mxu0 0.0
    %67 = vmatpush.msra.mxu0 %v47
    %68 = vmatpush.msra.mxu0 %v43
    %69 = vmatpush.msra.mxu0 %v39
    %70 = vmatpush.msra.mxu0 %v35
    %71 = vmatmul.f32.gmra.mxu0 %v53
    %v72 = vpop.f32.mrf.mxu0
    %v73 = vadd.f32 0.0, %v72
    %74 = vdwg.mxu0
    %75 = vmatpush.msra.mxu0 0.0
    %76 = vmatpush.msra.mxu0 0.0
    %77 = vmatpush.msra.mxu0 0.0
    %78 = vmatpush.msra.mxu0 0.0
    %79 = vmatpush.msra.mxu0 0.0
    %80 = vmatpush.msra.mxu0 0.0
    %81 = vmatpush.msra.mxu0 0.0
    %82 = vmatpush.msra.mxu0 0.0
    %83 = vmatpush.msra.mxu0 0.0
    %84 = vmatpush.msra.mxu0 0.0
    %85 = vmatpush.msra.mxu0 0.0
    %86 = vmatpush.msra.mxu0 0.0
    %87 = vmatpush.msra.mxu0 %v48
    %88 = vmatpush.msra.mxu0 %v44
    %89 = vmatpush.msra.mxu0 %v40
    %90 = vmatpush.msra.mxu0 %v36
    %91 = vmatmul.f32.gmra.mxu0 %v53
    %v92 = vpop.f32.mrf.mxu0
    %v93 = vadd.f32 0.0, %v92
    %94 = vdwg.mxu0
    %95 = vmatpush.msra.mxu0 0.0
    %96 = vmatpush.msra.mxu0 0.0
    %97 = vmatpush.msra.mxu0 0.0
    %98 = vmatpush.msra.mxu0 0.0
    %99 = vmatpush.msra.mxu0 0.0
    %100 = vmatpush.msra.mxu0 0.0
    %101 = vmatpush.msra.mxu0 0.0
    %102 = vmatpush.msra.mxu0 0.0
    %103 = vmatpush.msra.mxu0 0.0
    %104 = vmatpush.msra.mxu0 0.0
    %105 = vmatpush.msra.mxu0 0.0
    %106 = vmatpush.msra.mxu0 0.0
    %107 = vmatpush.msra.mxu0 %v49
    %108 = vmatpush.msra.mxu0 %v45
    %109 = vmatpush.msra.mxu0 %v41
    %110 = vmatpush.msra.mxu0 %v37
    %111 = vmatmul.f32.gmra.mxu0 %v53
    %v112 = vpop.f32.mrf.mxu0
    %v113 = vadd.f32 0.0, %v112
    %114 = vdwg.mxu0
    %115 = vmatpush.msra.mxu0 0.0
    %116 = vmatpush.msra.mxu0 0.0
    %117 = vmatpush.msra.mxu0 0.0
    %118 = vmatpush.msra.mxu0 0.0
    %119 = vmatpush.msra.mxu0 0.0
    %120 = vmatpush.msra.mxu0 0.0
    %121 = vmatpush.msra.mxu0 0.0
    %122 = vmatpush.msra.mxu0 0.0
    %123 = vmatpush.msra.mxu0 0.0
    %124 = vmatpush.msra.mxu0 0.0
    %125 = vmatpush.msra.mxu0 0.0
    %126 = vmatpush.msra.mxu0 0.0
    %127 = vmatpush.msra.mxu0 %v50
    %128 = vmatpush.msra.mxu0 %v46
    %129 = vmatpush.msra.mxu0 %v42
    %130 = vmatpush.msra.mxu0 %v38
    %131 = vmatmul.f32.gmra.mxu0 %v53
    %v132 = vpop.f32.mrf.mxu0
    %v133 = vadd.f32 0.0, %v132
    %134 = vdwg.mxu0
    %v135 = vld [vmem:[%s7] sm:$0xf]
    %v136 = vlaneseq
    %v137 = vand.u32 %v136, 127
    %v138 = vadd.s32 %v137, 128
    %v139 = vadd.s32 %v137, 256
    %v140 = vadd.s32 %v137, 384
    %v141 = vand.u32 %v137, 15
    %v142 = vand.u32 %v138, 15
    %v143 = vand.u32 %v139, 15
    %v144 = vand.u32 %v140, 15
    %v145 = vshra.s32 %v137, 4
    %v146 = vshra.s32 %v138, 4
    %v147 = vshra.s32 %v139, 4
    %v148 = vshra.s32 %v140, 4
    %v149 = vand.u32 %v145, 15
    %v150 = vand.u32 %v146, 15
    %v151 = vand.u32 %v147, 15
    %v152 = vand.u32 %v148, 15
    %vm153 = vcmp.ge.s32.totalorder %v149, 4
    %vm154 = vcmp.ge.s32.totalorder %v150, 4
    %vm155 = vcmp.ge.s32.totalorder %v151, 4
    %vm156 = vcmp.ge.s32.totalorder %v152, 4
    %vm157 = vcmp.lt.s32.totalorder %v149, 12
    %vm158 = vcmp.lt.s32.totalorder %v150, 12
    %vm159 = vcmp.lt.s32.totalorder %v151, 12
    %vm160 = vcmp.lt.s32.totalorder %v152, 12
    %vm161 = vcmp.ge.s32.totalorder %v141, 4
    %vm162 = vcmp.ge.s32.totalorder %v142, 4
    %vm163 = vcmp.ge.s32.totalorder %v143, 4
    %vm164 = vcmp.ge.s32.totalorder %v144, 4
    %vm165 = vcmp.lt.s32.totalorder %v141, 12
    %vm166 = vcmp.lt.s32.totalorder %v142, 12
    %vm167 = vcmp.lt.s32.totalorder %v143, 12
    %vm168 = vcmp.lt.s32.totalorder %v144, 12
    %169 = vrot.lane.b32.xlu0 %v73, 68
    %v170 = vpop.permute.xlu0 %169
    %171 = vrot.lane.b32.xlu0 %v93, 68
    %v172 = vpop.permute.xlu0 %171
    %173 = vrot.lane.b32.xlu0 %v113, 68
    %v174 = vpop.permute.xlu0 %173
    %175 = vrot.lane.b32.xlu0 %v133, 68
    %v176 = vpop.permute.xlu0 %175
    %vm177 = vcmp.lt.s32.totalorder %v137, 68
    %v178 = vsel %vm177, %v174, %v176
    %v179 = vsel %vm177, %v172, %v174
    %v180 = vsel %vm177, %v170, %v172
    %v181 = vsel %vm177, %v176, %v170
    %vm182 = vmand %vm153, %vm161
    %vm183 = vmand %vm154, %vm162
    %vm184 = vmand %vm155, %vm163
    %vm185 = vmand %vm156, %vm164
    %v186 = vsel %vm182, %v181, 0.0
    %v187 = vsel %vm183, %v180, 0.0
    %v188 = vsel %vm184, %v179, 0.0
    %v189 = vsel %vm185, %v178, 0.0
    %190 = vrot.lane.b32.xlu0 %v73, 64
    %v191 = vpop.permute.xlu0 %190
    %192 = vrot.lane.b32.xlu0 %v93, 64
    %v193 = vpop.permute.xlu0 %192
    %194 = vrot.lane.b32.xlu0 %v113, 64
    %v195 = vpop.permute.xlu0 %194
    %196 = vrot.lane.b32.xlu0 %v133, 64
    %v197 = vpop.permute.xlu0 %196
    %vm198 = vcmp.lt.s32.totalorder %v137, 64
    %v199 = vsel %vm198, %v195, %v197
    %v200 = vsel %vm198, %v193, %v195
    %v201 = vsel %vm198, %v191, %v193
    %v202 = vsel %vm198, %v197, %v191
    %v203 = vsel %vm153, %v202, 0.0
    %v204 = vsel %vm154, %v201, 0.0
    %v205 = vsel %vm155, %v200, 0.0
    %v206 = vsel %vm156, %v199, 0.0
    %v207 = vpack.c.bf16 %v187, %v186
    %v208 = vpack.c.bf16 %v189, %v188
    %v209 = vpack.c.bf16 %v204, %v203
    %v210 = vpack.c.bf16 %v206, %v205
    %211 = vst [vmem:[#allocation2] sm:$0xff] %v207
    %212 = vst [vmem:[#allocation2 + $0x8] sm:$0xff] %v208
    %213 = vst [vmem:[#allocation2 + $0x10] sm:$0xff] %v209
    %214 = vst [vmem:[#allocation2 + $0x18] sm:$0xff] %v210
    %215 = vrot.lane.b32.xlu0 %v73, 60
    %v216 = vpop.permute.xlu0 %215
    %217 = vrot.lane.b32.xlu0 %v93, 60
    %v218 = vpop.permute.xlu0 %217
    %219 = vrot.lane.b32.xlu0 %v113, 60
    %v220 = vpop.permute.xlu0 %219
    %221 = vrot.lane.b32.xlu0 %v133, 60
    %v222 = vpop.permute.xlu0 %221
    %vm223 = vcmp.lt.s32.totalorder %v137, 60
    %v224 = vsel %vm223, %v220, %v222
    %v225 = vsel %vm223, %v218, %v220
    %v226 = vsel %vm223, %v216, %v218
    %v227 = vsel %vm223, %v222, %v216
    %vm228 = vmand %vm153, %vm165
    %vm229 = vmand %vm154, %vm166
    %vm230 = vmand %vm155, %vm167
    %vm231 = vmand %vm156, %vm168
    %v232 = vsel %vm228, %v227, 0.0
    %v233 = vsel %vm229, %v226, 0.0
    %v234 = vsel %vm230, %v225, 0.0
    %v235 = vsel %vm231, %v224, 0.0
    %236 = vrot.lane.b32.xlu0 %v73, 4
    %v237 = vpop.permute.xlu0 %236
    %238 = vrot.lane.b32.xlu0 %v93, 4
    %v239 = vpop.permute.xlu0 %238
    %240 = vrot.lane.b32.xlu0 %v113, 4
    %v241 = vpop.permute.xlu0 %240
    %242 = vrot.lane.b32.xlu0 %v133, 4
    %v243 = vpop.permute.xlu0 %242
    %vm244 = vcmp.lt.s32.totalorder %v137, 4
    %v245 = vsel %vm244, %v241, %v243
    %v246 = vsel %vm244, %v239, %v241
    %v247 = vsel %vm244, %v237, %v239
    %v248 = vsel %vm244, %v243, %v237
    %v249 = vsel %vm161, %v248, 0.0
    %v250 = vsel %vm162, %v247, 0.0
    %v251 = vsel %vm163, %v246, 0.0
    %v252 = vsel %vm164, %v245, 0.0
    %v253 = vpack.c.bf16 %v233, %v232
    %v254 = vpack.c.bf16 %v235, %v234
    %v255 = vpack.c.bf16 %v250, %v249
    %v256 = vpack.c.bf16 %v252, %v251
    %257 = vst [vmem:[#allocation2 + $0x20] sm:$0xff] %v253
    %258 = vst [vmem:[#allocation2 + $0x28] sm:$0xff] %v254
    %259 = vst [vmem:[#allocation2 + $0x30] sm:$0xff] %v255
    %260 = vst [vmem:[#allocation2 + $0x38] sm:$0xff] %v256
    %261 = vrot.lane.b32.xlu0 %v73, 124
    %v262 = vpop.permute.xlu0 %261
    %263 = vrot.lane.b32.xlu0 %v93, 124
    %v264 = vpop.permute.xlu0 %263
    %265 = vrot.lane.b32.xlu0 %v113, 124
    %v266 = vpop.permute.xlu0 %265
    %267 = vrot.lane.b32.xlu0 %v133, 124
    %v268 = vpop.permute.xlu0 %267
    %vm269 = vcmp.lt.s32.totalorder %v137, 124
    %v270 = vsel %vm269, %v266, %v268
    %v271 = vsel %vm269, %v264, %v266
    %v272 = vsel %vm269, %v262, %v264
    %v273 = vsel %vm269, %v268, %v262
    %v274 = vsel %vm165, %v272, 0.0
    %v275 = vsel %vm166, %v271, 0.0
    %v276 = vsel %vm167, %v270, 0.0
    %v277 = vsel %vm168, %v273, 0.0
    %v278 = vpack.c.bf16 %v93, %v73
    %v279 = vpack.c.bf16 %v133, %v113
    %v280 = vpack.c.bf16 %v275, %v274
    %v281 = vpack.c.bf16 %v277, %v276
    %282 = vst [vmem:[#allocation2 + $0x40] sm:$0xff] %v278
    %283 = vst [vmem:[#allocation2 + $0x48] sm:$0xff] %v279
    %284 = vst [vmem:[#allocation2 + $0x50] sm:$0xff] %v280
    %285 = vst [vmem:[#allocation2 + $0x58] sm:$0xff] %v281
    %vm286 = vmand %vm157, %vm161
    %vm287 = vmand %vm158, %vm162
    %vm288 = vmand %vm159, %vm163
    %vm289 = vmand %vm160, %vm164
    %v290 = vsel %vm286, %v180, 0.0
    %v291 = vsel %vm287, %v179, 0.0
    %v292 = vsel %vm288, %v178, 0.0
    %v293 = vsel %vm289, %v181, 0.0
    %v294 = vsel %vm157, %v201, 0.0
    %v295 = vsel %vm158, %v200, 0.0
    %v296 = vsel %vm159, %v199, 0.0
    %v297 = vsel %vm160, %v202, 0.0
    %v298 = vpack.c.bf16 %v291, %v290
    %v299 = vpack.c.bf16 %v293, %v292
    %v300 = vpack.c.bf16 %v295, %v294
    %v301 = vpack.c.bf16 %v297, %v296
    %302 = vst [vmem:[#allocation2 + $0x60] sm:$0xff] %v298
    %303 = vst [vmem:[#allocation2 + $0x68] sm:$0xff] %v299
    %304 = vst [vmem:[#allocation2 + $0x70] sm:$0xff] %v300
    %305 = vst [vmem:[#allocation2 + $0x78] sm:$0xff] %v301
    %vm306 = vmand %vm157, %vm165
    %vm307 = vmand %vm158, %vm166
    %vm308 = vmand %vm159, %vm167
    %vm309 = vmand %vm160, %vm168
    %v310 = vsel %vm306, %v226, 0.0
    %v311 = vsel %vm307, %v225, 0.0
    %v312 = vsel %vm308, %v224, 0.0
    %v313 = vsel %vm309, %v227, 0.0
    %v314 = vpack.c.bf16 %v311, %v310
    %v315 = vpack.c.bf16 %v313, %v312
    %v316 = vpack.c.bf16 0.0, 0.0
    %317 = vst [vmem:[#allocation2 + $0x80] sm:$0xff] %v314
    %318 = vst [vmem:[#allocation2 + $0x88] sm:$0xff] %v315
    %319 = vst [vmem:[#allocation2 + $0x90] sm:$0xff] %v316
    %320 = vst [vmem:[#allocation2 + $0x98] sm:$0xff] %v316
    %v321 = vld [vmem:[#allocation2] sm:$0xff]
    %v322 = vld [vmem:[#allocation2 + $0x8] sm:$0xff]
    %v323 = vld [vmem:[#allocation2 + $0x10] sm:$0xff]
    %v324 = vld [vmem:[#allocation2 + $0x18] sm:$0xff]
    %v325 = vld [vmem:[#allocation2 + $0x20] sm:$0xff]
    %v326 = vld [vmem:[#allocation2 + $0x28] sm:$0xff]
    %v327 = vld [vmem:[#allocation2 + $0x30] sm:$0xff]
    %v328 = vld [vmem:[#allocation2 + $0x38] sm:$0xff]
    %v329 = vld [vmem:[#allocation2 + $0x40] sm:$0xff]
    %v330 = vld [vmem:[#allocation2 + $0x48] sm:$0xff]
    %v331 = vld [vmem:[#allocation2 + $0x50] sm:$0xff]
    %v332 = vld [vmem:[#allocation2 + $0x58] sm:$0xff]
    %v333 = vld [vmem:[#allocation2 + $0x60] sm:$0xff]
    %v334 = vld [vmem:[#allocation2 + $0x68] sm:$0xff]
    %v335 = vld [vmem:[#allocation2 + $0x70] sm:$0xff]
    %v336 = vld [vmem:[#allocation2 + $0x78] sm:$0xff]
    %v337 = vld [vmem:[#allocation2 + $0x80] sm:$0xff]
    %v338 = vld [vmem:[#allocation2 + $0x88] sm:$0xff]
    %v339 = vld [vmem:[#allocation2 + $0x90] sm:$0xff]
    %v340 = vld [vmem:[#allocation2 + $0x98] sm:$0xff]
    %v361 = vunpack.c.l.b16 %v321
    %v362 = vunpack.c.h.b16 %v321
    %v363 = vunpack.c.l.b16 %v322
    %v364 = vunpack.c.h.b16 %v322
    %v365 = vunpack.c.l.b16 %v323
    %v366 = vunpack.c.h.b16 %v323
    %v367 = vunpack.c.l.b16 %v324
    %v368 = vunpack.c.h.b16 %v324
    %v369 = vunpack.c.l.b16 %v325
    %v370 = vunpack.c.h.b16 %v325
    %v371 = vunpack.c.l.b16 %v326
    %v372 = vunpack.c.h.b16 %v326
    %v373 = vunpack.c.l.b16 %v327
    %v374 = vunpack.c.h.b16 %v327
    %v375 = vunpack.c.l.b16 %v328
    %v376 = vunpack.c.h.b16 %v328
    %v377 = vunpack.c.l.b16 %v329
    %v378 = vunpack.c.h.b16 %v329
    %v379 = vunpack.c.l.b16 %v330
    %v380 = vunpack.c.h.b16 %v330
    %v381 = vunpack.c.l.b16 %v331
    %v382 = vunpack.c.h.b16 %v331
    %v383 = vunpack.c.l.b16 %v332
    %v384 = vunpack.c.h.b16 %v332
    %v385 = vunpack.c.l.b16 %v333
    %v386 = vunpack.c.h.b16 %v333
    %v387 = vunpack.c.l.b16 %v334
    %v388 = vunpack.c.h.b16 %v334
    %v389 = vunpack.c.l.b16 %v335
    %v390 = vunpack.c.h.b16 %v335
    %v391 = vunpack.c.l.b16 %v336
    %v392 = vunpack.c.h.b16 %v336
    %v393 = vunpack.c.l.b16 %v337
    %v394 = vunpack.c.h.b16 %v337
    %v395 = vunpack.c.l.b16 %v338
    %v396 = vunpack.c.h.b16 %v338
    %v397 = vunpack.c.l.b16 %v339
    %v398 = vunpack.c.h.b16 %v339
    %v399 = vunpack.c.l.b16 %v340
    %v400 = vunpack.c.h.b16 %v340
    %v401 = vpack.c.b16 %v365, %v361
    %v402 = vpack.c.b16 %v366, %v362
    %v403 = vpack.c.b16 %v367, %v363
    %v404 = vpack.c.b16 %v368, %v364
    %v405 = vpack.c.b16 %v373, %v369
    %v406 = vpack.c.b16 %v374, %v370
    %v407 = vpack.c.b16 %v375, %v371
    %v408 = vpack.c.b16 %v376, %v372
    %v409 = vpack.c.b16 %v381, %v377
    %v410 = vpack.c.b16 %v382, %v378
    %v411 = vpack.c.b16 %v383, %v379
    %v412 = vpack.c.b16 %v384, %v380
    %v413 = vpack.c.b16 %v389, %v385
    %v414 = vpack.c.b16 %v390, %v386
    %v415 = vpack.c.b16 %v391, %v387
    %v416 = vpack.c.b16 %v392, %v388
    %v417 = vpack.c.b16 %v397, %v393
    %v418 = vpack.c.b16 %v398, %v394
    %v419 = vpack.c.b16 %v399, %v395
    %v420 = vpack.c.b16 %v400, %v396
    %vm441 = vcmask 654336
    %v443 = vsel %vm441, %v135, 0
    %445 = vmatpush.bf16.msra.mxu0 0
    %446 = vmatpush.bf16.msra.mxu0 0
    %447 = vmatpush.bf16.msra.mxu0 0
    %448 = vmatpush.bf16.msra.mxu0 %v417
    %449 = vmatpush.bf16.msra.mxu0 %v413
    %450 = vmatpush.bf16.msra.mxu0 %v409
    %451 = vmatpush.bf16.msra.mxu0 %v405
    %452 = vmatpush.bf16.msra.mxu0 %v401
    %453 = vmatmul.bf16.gmra.mxu0 %v443
    %v454 = vpop.f32.mrf.mxu0
    %v455 = vadd.f32 0.0, %v454
    %v456 = vpop.f32.mrf.mxu0
    %457 = vdwg.mxu0
    %458 = vmatpush.bf16.msra.mxu0 0
    %459 = vmatpush.bf16.msra.mxu0 0
    %460 = vmatpush.bf16.msra.mxu0 0
    %461 = vmatpush.bf16.msra.mxu0 %v418
    %462 = vmatpush.bf16.msra.mxu0 %v414
    %463 = vmatpush.bf16.msra.mxu0 %v410
    %464 = vmatpush.bf16.msra.mxu0 %v406
    %465 = vmatpush.bf16.msra.mxu0 %v402
    %466 = vmatmul.bf16.gmra.mxu0 %v443
    %v467 = vpop.f32.mrf.mxu0
    %v468 = vadd.f32 0.0, %v467
    %v469 = vpop.f32.mrf.mxu0
    %470 = vdwg.mxu0
    %471 = vmatpush.bf16.msra.mxu0 0
    %472 = vmatpush.bf16.msra.mxu0 0
    %473 = vmatpush.bf16.msra.mxu0 0
    %474 = vmatpush.bf16.msra.mxu0 %v419
    %475 = vmatpush.bf16.msra.mxu0 %v415
    %476 = vmatpush.bf16.msra.mxu0 %v411
    %477 = vmatpush.bf16.msra.mxu0 %v407
    %478 = vmatpush.bf16.msra.mxu0 %v403
    %479 = vmatmul.bf16.gmra.mxu0 %v443
    %v480 = vpop.f32.mrf.mxu0
    %v481 = vadd.f32 0.0, %v480
    %v482 = vpop.f32.mrf.mxu0
    %483 = vdwg.mxu0
    %484 = vmatpush.bf16.msra.mxu0 0
    %485 = vmatpush.bf16.msra.mxu0 0
    %486 = vmatpush.bf16.msra.mxu0 0
    %487 = vmatpush.bf16.msra.mxu0 %v420
    %488 = vmatpush.bf16.msra.mxu0 %v416
    %489 = vmatpush.bf16.msra.mxu0 %v412
    %490 = vmatpush.bf16.msra.mxu0 %v408
    %491 = vmatpush.bf16.msra.mxu0 %v404
    %492 = vmatmul.bf16.gmra.mxu0 %v443
    %v493 = vpop.f32.mrf.mxu0
    %v494 = vadd.f32 0.0, %v493
    %v495 = vpop.f32.mrf.mxu0
    %496 = vdwg.mxu0
    %v497 = vld [vmem:[%s8] sm:$0x1]
    %498 = vrot.lane.b32.xlu0 %v455, 68
    %v499 = vpop.permute.xlu0 %498
    %500 = vrot.lane.b32.xlu0 %v468, 68
    %v501 = vpop.permute.xlu0 %500
    %502 = vrot.lane.b32.xlu0 %v481, 68
    %v503 = vpop.permute.xlu0 %502
    %504 = vrot.lane.b32.xlu0 %v494, 68
    %v505 = vpop.permute.xlu0 %504
    %v506 = vsel %vm177, %v503, %v505
    %v507 = vsel %vm177, %v501, %v503
    %v508 = vsel %vm177, %v499, %v501
    %v509 = vsel %vm177, %v505, %v499
    %v510 = vsel %vm182, %v509, 0.0
    %v511 = vsel %vm183, %v508, 0.0
    %v512 = vsel %vm184, %v507, 0.0
    %v513 = vsel %vm185, %v506, 0.0
    %514 = vrot.lane.b32.xlu0 %v455, 64
    %v515 = vpop.permute.xlu0 %514
    %516 = vrot.lane.b32.xlu0 %v468, 64
    %v517 = vpop.permute.xlu0 %516
    %518 = vrot.lane.b32.xlu0 %v481, 64
    %v519 = vpop.permute.xlu0 %518
    %520 = vrot.lane.b32.xlu0 %v494, 64
    %v521 = vpop.permute.xlu0 %520
    %v522 = vsel %vm198, %v519, %v521
    %v523 = vsel %vm198, %v517, %v519
    %v524 = vsel %vm198, %v515, %v517
    %v525 = vsel %vm198, %v521, %v515
    %v526 = vsel %vm153, %v525, 0.0
    %v527 = vsel %vm154, %v524, 0.0
    %v528 = vsel %vm155, %v523, 0.0
    %v529 = vsel %vm156, %v522, 0.0
    %v530 = vpack.c.bf16 %v511, %v510
    %v531 = vpack.c.bf16 %v513, %v512
    %v532 = vpack.c.bf16 %v527, %v526
    %v533 = vpack.c.bf16 %v529, %v528
    %534 = vst [vmem:[#allocation2] sm:$0xff] %v530
    %535 = vst [vmem:[#allocation2 + $0x8] sm:$0xff] %v531
    %536 = vst [vmem:[#allocation2 + $0x10] sm:$0xff] %v532
    %537 = vst [vmem:[#allocation2 + $0x18] sm:$0xff] %v533
    %538 = vrot.lane.b32.xlu0 %v455, 60
    %v539 = vpop.permute.xlu0 %538
    %540 = vrot.lane.b32.xlu0 %v468, 60
    %v541 = vpop.permute.xlu0 %540
    %542 = vrot.lane.b32.xlu0 %v481, 60
    %v543 = vpop.permute.xlu0 %542
    %544 = vrot.lane.b32.xlu0 %v494, 60
    %v545 = vpop.permute.xlu0 %544
    %v546 = vsel %vm223, %v543, %v545
    %v547 = vsel %vm223, %v541, %v543
    %v548 = vsel %vm223, %v539, %v541
    %v549 = vsel %vm223, %v545, %v539
    %v550 = vsel %vm228, %v549, 0.0
    %v551 = vsel %vm229, %v548, 0.0
    %v552 = vsel %vm230, %v547, 0.0
    %v553 = vsel %vm231, %v546, 0.0
    %554 = vrot.lane.b32.xlu0 %v455, 4
    %v555 = vpop.permute.xlu0 %554
    %556 = vrot.lane.b32.xlu0 %v468, 4
    %v557 = vpop.permute.xlu0 %556
    %558 = vrot.lane.b32.xlu0 %v481, 4
    %v559 = vpop.permute.xlu0 %558
    %560 = vrot.lane.b32.xlu0 %v494, 4
    %v561 = vpop.permute.xlu0 %560
    %v562 = vsel %vm244, %v559, %v561
    %v563 = vsel %vm244, %v557, %v559
    %v564 = vsel %vm244, %v555, %v557
    %v565 = vsel %vm244, %v561, %v555
    %v566 = vsel %vm161, %v565, 0.0
    %v567 = vsel %vm162, %v564, 0.0
    %v568 = vsel %vm163, %v563, 0.0
    %v569 = vsel %vm164, %v562, 0.0
    %v570 = vpack.c.bf16 %v551, %v550
    %v571 = vpack.c.bf16 %v553, %v552
    %v572 = vpack.c.bf16 %v567, %v566
    %v573 = vpack.c.bf16 %v569, %v568
    %574 = vst [vmem:[#allocation2 + $0x20] sm:$0xff] %v570
    %575 = vst [vmem:[#allocation2 + $0x28] sm:$0xff] %v571
    %576 = vst [vmem:[#allocation2 + $0x30] sm:$0xff] %v572
    %577 = vst [vmem:[#allocation2 + $0x38] sm:$0xff] %v573
    %578 = vrot.lane.b32.xlu0 %v455, 124
    %v579 = vpop.permute.xlu0 %578
    %580 = vrot.lane.b32.xlu0 %v468, 124
    %v581 = vpop.permute.xlu0 %580
    %582 = vrot.lane.b32.xlu0 %v481, 124
    %v583 = vpop.permute.xlu0 %582
    %584 = vrot.lane.b32.xlu0 %v494, 124
    %v585 = vpop.permute.xlu0 %584
    %v586 = vsel %vm269, %v583, %v585
    %v587 = vsel %vm269, %v581, %v583
    %v588 = vsel %vm269, %v579, %v581
    %v589 = vsel %vm269, %v585, %v579
    %v590 = vsel %vm165, %v588, 0.0
    %v591 = vsel %vm166, %v587, 0.0
    %v592 = vsel %vm167, %v586, 0.0
    %v593 = vsel %vm168, %v589, 0.0
    %v594 = vpack.c.bf16 %v468, %v455
    %v595 = vpack.c.bf16 %v494, %v481
    %v596 = vpack.c.bf16 %v591, %v590
    %v597 = vpack.c.bf16 %v593, %v592
    %598 = vst [vmem:[#allocation2 + $0x40] sm:$0xff] %v594
    %599 = vst [vmem:[#allocation2 + $0x48] sm:$0xff] %v595
    %600 = vst [vmem:[#allocation2 + $0x50] sm:$0xff] %v596
    %601 = vst [vmem:[#allocation2 + $0x58] sm:$0xff] %v597
    %v602 = vsel %vm286, %v508, 0.0
    %v603 = vsel %vm287, %v507, 0.0
    %v604 = vsel %vm288, %v506, 0.0
    %v605 = vsel %vm289, %v509, 0.0
    %v606 = vsel %vm157, %v524, 0.0
    %v607 = vsel %vm158, %v523, 0.0
    %v608 = vsel %vm159, %v522, 0.0
    %v609 = vsel %vm160, %v525, 0.0
    %v610 = vpack.c.bf16 %v603, %v602
    %v611 = vpack.c.bf16 %v605, %v604
    %v612 = vpack.c.bf16 %v607, %v606
    %v613 = vpack.c.bf16 %v609, %v608
    %614 = vst [vmem:[#allocation2 + $0x60] sm:$0xff] %v610
    %615 = vst [vmem:[#allocation2 + $0x68] sm:$0xff] %v611
    %616 = vst [vmem:[#allocation2 + $0x70] sm:$0xff] %v612
    %617 = vst [vmem:[#allocation2 + $0x78] sm:$0xff] %v613
    %v618 = vsel %vm306, %v548, 0.0
    %v619 = vsel %vm307, %v547, 0.0
    %v620 = vsel %vm308, %v546, 0.0
    %v621 = vsel %vm309, %v549, 0.0
    %v622 = vpack.c.bf16 %v619, %v618
    %v623 = vpack.c.bf16 %v621, %v620
    %624 = vst [vmem:[#allocation2 + $0x80] sm:$0xff] %v622
    %625 = vst [vmem:[#allocation2 + $0x88] sm:$0xff] %v623
    %626 = vst [vmem:[#allocation2 + $0x90] sm:$0xff] %v316
    %627 = vst [vmem:[#allocation2 + $0x98] sm:$0xff] %v316
    %v628 = vld [vmem:[#allocation2] sm:$0xff]
    %v629 = vld [vmem:[#allocation2 + $0x8] sm:$0xff]
    %v630 = vld [vmem:[#allocation2 + $0x10] sm:$0xff]
    %v631 = vld [vmem:[#allocation2 + $0x18] sm:$0xff]
    %v632 = vld [vmem:[#allocation2 + $0x20] sm:$0xff]
    %v633 = vld [vmem:[#allocation2 + $0x28] sm:$0xff]
    %v634 = vld [vmem:[#allocation2 + $0x30] sm:$0xff]
    %v635 = vld [vmem:[#allocation2 + $0x38] sm:$0xff]
    %v636 = vld [vmem:[#allocation2 + $0x40] sm:$0xff]
    %v637 = vld [vmem:[#allocation2 + $0x48] sm:$0xff]
    %v638 = vld [vmem:[#allocation2 + $0x50] sm:$0xff]
    %v639 = vld [vmem:[#allocation2 + $0x58] sm:$0xff]
    %v640 = vld [vmem:[#allocation2 + $0x60] sm:$0xff]
    %v641 = vld [vmem:[#allocation2 + $0x68] sm:$0xff]
    %v642 = vld [vmem:[#allocation2 + $0x70] sm:$0xff]
    %v643 = vld [vmem:[#allocation2 + $0x78] sm:$0xff]
    %v644 = vld [vmem:[#allocation2 + $0x80] sm:$0xff]
    %v645 = vld [vmem:[#allocation2 + $0x88] sm:$0xff]
    %v646 = vld [vmem:[#allocation2 + $0x90] sm:$0xff]
    %v647 = vld [vmem:[#allocation2 + $0x98] sm:$0xff]
    %v668 = vunpack.c.l.b16 %v628
    %v669 = vunpack.c.h.b16 %v628
    %v670 = vunpack.c.l.b16 %v629
    %v671 = vunpack.c.h.b16 %v629
    %v672 = vunpack.c.l.b16 %v630
    %v673 = vunpack.c.h.b16 %v630
    %v674 = vunpack.c.l.b16 %v631
    %v675 = vunpack.c.h.b16 %v631
    %v676 = vunpack.c.l.b16 %v632
    %v677 = vunpack.c.h.b16 %v632
    %v678 = vunpack.c.l.b16 %v633
    %v679 = vunpack.c.h.b16 %v633
    %v680 = vunpack.c.l.b16 %v634
    %v681 = vunpack.c.h.b16 %v634
    %v682 = vunpack.c.l.b16 %v635
    %v683 = vunpack.c.h.b16 %v635
    %v684 = vunpack.c.l.b16 %v636
    %v685 = vunpack.c.h.b16 %v636
    %v686 = vunpack.c.l.b16 %v637
    %v687 = vunpack.c.h.b16 %v637
    %v688 = vunpack.c.l.b16 %v638
    %v689 = vunpack.c.h.b16 %v638
    %v690 = vunpack.c.l.b16 %v639
    %v691 = vunpack.c.h.b16 %v639
    %v692 = vunpack.c.l.b16 %v640
    %v693 = vunpack.c.h.b16 %v640
    %v694 = vunpack.c.l.b16 %v641
    %v695 = vunpack.c.h.b16 %v641
    %v696 = vunpack.c.l.b16 %v642
    %v697 = vunpack.c.h.b16 %v642
    %v698 = vunpack.c.l.b16 %v643
    %v699 = vunpack.c.h.b16 %v643
    %v700 = vunpack.c.l.b16 %v644
    %v701 = vunpack.c.h.b16 %v644
    %v702 = vunpack.c.l.b16 %v645
    %v703 = vunpack.c.h.b16 %v645
    %v704 = vunpack.c.l.b16 %v646
    %v705 = vunpack.c.h.b16 %v646
    %v706 = vunpack.c.l.b16 %v647
    %v707 = vunpack.c.h.b16 %v647
    %v708 = vpack.c.b16 %v672, %v668
    %v709 = vpack.c.b16 %v673, %v669
    %v710 = vpack.c.b16 %v674, %v670
    %v711 = vpack.c.b16 %v675, %v671
    %v712 = vpack.c.b16 %v680, %v676
    %v713 = vpack.c.b16 %v681, %v677
    %v714 = vpack.c.b16 %v682, %v678
    %v715 = vpack.c.b16 %v683, %v679
    %v716 = vpack.c.b16 %v688, %v684
    %v717 = vpack.c.b16 %v689, %v685
    %v718 = vpack.c.b16 %v690, %v686
    %v719 = vpack.c.b16 %v691, %v687
    %v720 = vpack.c.b16 %v696, %v692
    %v721 = vpack.c.b16 %v697, %v693
    %v722 = vpack.c.b16 %v698, %v694
    %v723 = vpack.c.b16 %v699, %v695
    %v724 = vpack.c.b16 %v704, %v700
    %v725 = vpack.c.b16 %v705, %v701
    %v726 = vpack.c.b16 %v706, %v702
    %v727 = vpack.c.b16 %v707, %v703
    %v749 = vsel %vm441, %v497, 0
    %751 = vmatpush.bf16.msra.mxu0 0
    %752 = vmatpush.bf16.msra.mxu0 0
    %753 = vmatpush.bf16.msra.mxu0 0
    %754 = vmatpush.bf16.msra.mxu0 %v724
    %755 = vmatpush.bf16.msra.mxu0 %v720
    %756 = vmatpush.bf16.msra.mxu0 %v716
    %757 = vmatpush.bf16.msra.mxu0 %v712
    %758 = vmatpush.bf16.msra.mxu0 %v708
    %759 = vmatmul.bf16.gmra.mxu0 %v749
    %v760 = vpop.f32.mrf.mxu0
    %v761 = vadd.f32 0.0, %v760
    %v762 = vpop.f32.mrf.mxu0
    %763 = vdwg.mxu0
    %764 = vmatpush.bf16.msra.mxu0 0
    %765 = vmatpush.bf16.msra.mxu0 0
    %766 = vmatpush.bf16.msra.mxu0 0
    %767 = vmatpush.bf16.msra.mxu0 %v725
    %768 = vmatpush.bf16.msra.mxu0 %v721
    %769 = vmatpush.bf16.msra.mxu0 %v717
    %770 = vmatpush.bf16.msra.mxu0 %v713
    %771 = vmatpush.bf16.msra.mxu0 %v709
    %772 = vmatmul.bf16.gmra.mxu0 %v749
    %v773 = vpop.f32.mrf.mxu0
    %v774 = vadd.f32 0.0, %v773
    %v775 = vpop.f32.mrf.mxu0
    %776 = vdwg.mxu0
    %777 = vmatpush.bf16.msra.mxu0 0
    %778 = vmatpush.bf16.msra.mxu0 0
    %779 = vmatpush.bf16.msra.mxu0 0
    %780 = vmatpush.bf16.msra.mxu0 %v726
    %781 = vmatpush.bf16.msra.mxu0 %v722
    %782 = vmatpush.bf16.msra.mxu0 %v718
    %783 = vmatpush.bf16.msra.mxu0 %v714
    %784 = vmatpush.bf16.msra.mxu0 %v710
    %785 = vmatmul.bf16.gmra.mxu0 %v749
    %v786 = vpop.f32.mrf.mxu0
    %v787 = vadd.f32 0.0, %v786
    %v788 = vpop.f32.mrf.mxu0
    %789 = vdwg.mxu0
    %790 = vmatpush.bf16.msra.mxu0 0
    %791 = vmatpush.bf16.msra.mxu0 0
    %792 = vmatpush.bf16.msra.mxu0 0
    %793 = vmatpush.bf16.msra.mxu0 %v727
    %794 = vmatpush.bf16.msra.mxu0 %v723
    %795 = vmatpush.bf16.msra.mxu0 %v719
    %796 = vmatpush.bf16.msra.mxu0 %v715
    %797 = vmatpush.bf16.msra.mxu0 %v711
    %798 = vmatmul.bf16.gmra.mxu0 %v749
    %v799 = vpop.f32.mrf.mxu0
    %v800 = vadd.f32 0.0, %v799
    %v801 = vpop.f32.mrf.mxu0
    %802 = vdwg.mxu0
    %v803 = vld [vmem:[%s1] sm:$0xff]
    %v804 = vld [vmem:[%s1 + $0x8] sm:$0xff]
    %v805 = vld [vmem:[%s1 + $0x10] sm:$0xff]
    %v806 = vld [vmem:[%s1 + $0x18] sm:$0xff]
    %v807 = vld [vmem:[%s1 + $0x20] sm:$0xff]
    %v808 = vld [vmem:[%s1 + $0x28] sm:$0xff]
    %v809 = vld [vmem:[%s1 + $0x30] sm:$0xff]
    %v810 = vld [vmem:[%s1 + $0x38] sm:$0xff]
    %v811 = vld [vmem:[%s1 + $0x40] sm:$0xff]
    %v812 = vld [vmem:[%s1 + $0x48] sm:$0xff]
    %v813 = vld [vmem:[%s1 + $0x50] sm:$0xff]
    %v814 = vld [vmem:[%s1 + $0x58] sm:$0xff]
    %v815 = vld [vmem:[%s1 + $0x60] sm:$0xff]
    %v816 = vld [vmem:[%s1 + $0x68] sm:$0xff]
    %v817 = vld [vmem:[%s1 + $0x70] sm:$0xff]
    %v818 = vld [vmem:[%s1 + $0x78] sm:$0xff]
    %v819 = vld [vmem:[%s1 + $0x80] sm:$0xff]
    %v820 = vld [vmem:[%s1 + $0x88] sm:$0xff]
    %v821 = vld [vmem:[%s1 + $0x90] sm:$0xff]
    %v822 = vld [vmem:[%s1 + $0x98] sm:$0xff]
    %v823 = vld [vmem:[%s1 + $0xa0] sm:$0xff]
    %v824 = vld [vmem:[%s1 + $0xa8] sm:$0xff]
    %v825 = vld [vmem:[%s1 + $0xb0] sm:$0xff]
    %v826 = vld [vmem:[%s1 + $0xb8] sm:$0xff]
    %v827 = vld [vmem:[%s1 + $0xc0] sm:$0xff]
    %v828 = vld [vmem:[%s1 + $0xc8] sm:$0xff]
    %v829 = vld [vmem:[%s1 + $0xd0] sm:$0xff]
    %v830 = vld [vmem:[%s1 + $0xd8] sm:$0xff]
    %v831 = vld [vmem:[%s1 + $0xe0] sm:$0xff]
    %v832 = vld [vmem:[%s1 + $0xe8] sm:$0xff]
    %v833 = vld [vmem:[%s1 + $0xf0] sm:$0xff]
    %v834 = vld [vmem:[%s1 + $0xf8] sm:$0xff]
    %v835 = vld [vmem:[%s1 + $0x100] sm:$0xff]
    %v836 = vld [vmem:[%s1 + $0x108] sm:$0xff]
    %v837 = vld [vmem:[%s1 + $0x110] sm:$0xff]
    %v838 = vld [vmem:[%s1 + $0x118] sm:$0xff]
    %v839 = vld [vmem:[%s1 + $0x120] sm:$0xff]
    %v840 = vld [vmem:[%s1 + $0x128] sm:$0xff]
    %v841 = vld [vmem:[%s1 + $0x130] sm:$0xff]
    %v842 = vld [vmem:[%s1 + $0x138] sm:$0xff]
    %v843 = vld [vmem:[%s1 + $0x140] sm:$0xff]
    %v844 = vld [vmem:[%s1 + $0x148] sm:$0xff]
    %v845 = vld [vmem:[%s1 + $0x150] sm:$0xff]
    %v846 = vld [vmem:[%s1 + $0x158] sm:$0xff]
    %v847 = vld [vmem:[%s1 + $0x160] sm:$0xff]
    %v848 = vld [vmem:[%s1 + $0x168] sm:$0xff]
    %v849 = vld [vmem:[%s1 + $0x170] sm:$0xff]
    %v850 = vld [vmem:[%s1 + $0x178] sm:$0xff]
    %v851 = vld [vmem:[%s1 + $0x180] sm:$0xff]
    %v852 = vld [vmem:[%s1 + $0x188] sm:$0xff]
    %v853 = vld [vmem:[%s1 + $0x190] sm:$0xff]
    %v854 = vld [vmem:[%s1 + $0x198] sm:$0xff]
    %v855 = vld [vmem:[%s1 + $0x1a0] sm:$0xff]
    %v856 = vld [vmem:[%s1 + $0x1a8] sm:$0xff]
    %v857 = vld [vmem:[%s1 + $0x1b0] sm:$0xff]
    %v858 = vld [vmem:[%s1 + $0x1b8] sm:$0xff]
    %v859 = vld [vmem:[%s1 + $0x1c0] sm:$0xff]
    %v860 = vld [vmem:[%s1 + $0x1c8] sm:$0xff]
    %v861 = vld [vmem:[%s1 + $0x1d0] sm:$0xff]
    %v862 = vld [vmem:[%s1 + $0x1d8] sm:$0xff]
    %v863 = vld [vmem:[%s1 + $0x1e0] sm:$0xff]
    %v864 = vld [vmem:[%s1 + $0x1e8] sm:$0xff]
    %v865 = vld [vmem:[%s1 + $0x1f0] sm:$0xff]
    %v866 = vld [vmem:[%s1 + $0x1f8] sm:$0xff]
    %867 = vmatpush.msra.mxu0 %v818
    %868 = vmatpush.msra.mxu0 %v817
    %869 = vmatpush.msra.mxu0 %v816
    %870 = vmatpush.msra.mxu0 %v815
    %871 = vmatpush.msra.mxu0 %v814
    %872 = vmatpush.msra.mxu0 %v813
    %873 = vmatpush.msra.mxu0 %v812
    %874 = vmatpush.msra.mxu0 %v811
    %875 = vmatpush.msra.mxu0 %v810
    %876 = vmatpush.msra.mxu0 %v809
    %877 = vmatpush.msra.mxu0 %v808
    %878 = vmatpush.msra.mxu0 %v807
    %879 = vmatpush.msra.mxu0 %v806
    %880 = vmatpush.msra.mxu0 %v805
    %881 = vmatpush.msra.mxu0 %v804
    %882 = vmatpush.msra.mxu0 %v803
    %883 = vmatmul.f32.gmra.mxu0 %v761
    %v884 = vpop.f32.mrf.mxu0
    %v885 = vadd.f32 0.0, %v884
    %886 = vdwg.mxu0
    %887 = vmatpush.msra.mxu0 %v834
    %888 = vmatpush.msra.mxu0 %v833
    %889 = vmatpush.msra.mxu0 %v832
    %890 = vmatpush.msra.mxu0 %v831
    %891 = vmatpush.msra.mxu0 %v830
    %892 = vmatpush.msra.mxu0 %v829
    %893 = vmatpush.msra.mxu0 %v828
    %894 = vmatpush.msra.mxu0 %v827
    %895 = vmatpush.msra.mxu0 %v826
    %896 = vmatpush.msra.mxu0 %v825
    %897 = vmatpush.msra.mxu0 %v824
    %898 = vmatpush.msra.mxu0 %v823
    %899 = vmatpush.msra.mxu0 %v822
    %900 = vmatpush.msra.mxu0 %v821
    %901 = vmatpush.msra.mxu0 %v820
    %902 = vmatpush.msra.mxu0 %v819
    %903 = vmatmul.f32.gmra.mxu0 %v774
    %v904 = vpop.f32.mrf.mxu0
    %v905 = vadd.f32 %v885, %v904
    %906 = vdwg.mxu0
    %907 = vmatpush.msra.mxu0 %v850
    %908 = vmatpush.msra.mxu0 %v849
    %909 = vmatpush.msra.mxu0 %v848
    %910 = vmatpush.msra.mxu0 %v847
    %911 = vmatpush.msra.mxu0 %v846
    %912 = vmatpush.msra.mxu0 %v845
    %913 = vmatpush.msra.mxu0 %v844
    %914 = vmatpush.msra.mxu0 %v843
    %915 = vmatpush.msra.mxu0 %v842
    %916 = vmatpush.msra.mxu0 %v841
    %917 = vmatpush.msra.mxu0 %v840
    %918 = vmatpush.msra.mxu0 %v839
    %919 = vmatpush.msra.mxu0 %v838
    %920 = vmatpush.msra.mxu0 %v837
    %921 = vmatpush.msra.mxu0 %v836
    %922 = vmatpush.msra.mxu0 %v835
    %923 = vmatmul.f32.gmra.mxu0 %v787
    %v924 = vpop.f32.mrf.mxu0
    %v925 = vadd.f32 %v905, %v924
    %926 = vdwg.mxu0
    %927 = vmatpush.msra.mxu0 %v866
    %928 = vmatpush.msra.mxu0 %v865
    %929 = vmatpush.msra.mxu0 %v864
    %930 = vmatpush.msra.mxu0 %v863
    %931 = vmatpush.msra.mxu0 %v862
    %932 = vmatpush.msra.mxu0 %v861
    %933 = vmatpush.msra.mxu0 %v860
    %934 = vmatpush.msra.mxu0 %v859
    %935 = vmatpush.msra.mxu0 %v858
    %936 = vmatpush.msra.mxu0 %v857
    %937 = vmatpush.msra.mxu0 %v856
    %938 = vmatpush.msra.mxu0 %v855
    %939 = vmatpush.msra.mxu0 %v854
    %940 = vmatpush.msra.mxu0 %v853
    %941 = vmatpush.msra.mxu0 %v852
    %942 = vmatpush.msra.mxu0 %v851
    %943 = vmatmul.f32.gmra.mxu0 %v800
    %v944 = vpop.f32.mrf.mxu0
    %v945 = vadd.f32 %v925, %v944
    %946 = vdwg.mxu0
    %vm947 = vcmask 8192
    %v948 = vsel %vm947, %v945, 0.0
    %949 = vadd.xlane.f32.xlu0 %v948
    %v950 = vpop.xlane.xlu0 %949
    %v951 = vrot.slane %v950, 4
    %v952 = vadd.f32 %v950, %v951
    %v953 = vrot.slane %v952, 2
    %v954 = vadd.f32 %v952, %v953
    %v955 = vrot.slane %v954, 1
    %v956 = vadd.f32 %v954, %v955
    %s957 = vtos %v956
    %v958 = vrcp.pop 2.0
    %v959 = vmul.f32 2.0, %v958
    %v960 = vsub.f32 1.0, %v959
    %v961 = vmul.f32 %v958, %v960
    %v962 = vadd.f32 %v958, %v961
    %vm963 = vweird.f32 %v958
    %v964 = vsel %vm963, %v958, %v962
    %s965 = vtos %v964
    %s966 = smul.f32 %s957, %s965
    %v967 = vstv %s966
    %v968 = vsub.f32 %v761, %v967
    %v969 = vsub.f32 %v774, %v967
    %v970 = vsub.f32 %v787, %v967
    %v971 = vsub.f32 %v800, %v967
    %v972 = vmul.f32 %v968, %v968
    %v973 = vmul.f32 %v969, %v969
    %v974 = vmul.f32 %v970, %v970
    %v975 = vmul.f32 %v971, %v971
    %976 = vmatpush.msra.mxu0 %v818
    %977 = vmatpush.msra.mxu0 %v817
    %978 = vmatpush.msra.mxu0 %v816
    %979 = vmatpush.msra.mxu0 %v815
    %980 = vmatpush.msra.mxu0 %v814
    %981 = vmatpush.msra.mxu0 %v813
    %982 = vmatpush.msra.mxu0 %v812
    %983 = vmatpush.msra.mxu0 %v811
    %984 = vmatpush.msra.mxu0 %v810
    %985 = vmatpush.msra.mxu0 %v809
    %986 = vmatpush.msra.mxu0 %v808
    %987 = vmatpush.msra.mxu0 %v807
    %988 = vmatpush.msra.mxu0 %v806
    %989 = vmatpush.msra.mxu0 %v805
    %990 = vmatpush.msra.mxu0 %v804
    %991 = vmatpush.msra.mxu0 %v803
    %992 = vmatmul.f32.gmra.mxu0 %v972
    %v993 = vpop.f32.mrf.mxu0
    %v994 = vadd.f32 0.0, %v993
    %995 = vdwg.mxu0
    %996 = vmatpush.msra.mxu0 %v834
    %997 = vmatpush.msra.mxu0 %v833
    %998 = vmatpush.msra.mxu0 %v832
    %999 = vmatpush.msra.mxu0 %v831
    %1000 = vmatpush.msra.mxu0 %v830
    %1001 = vmatpush.msra.mxu0 %v829
    %1002 = vmatpush.msra.mxu0 %v828
    %1003 = vmatpush.msra.mxu0 %v827
    %1004 = vmatpush.msra.mxu0 %v826
    %1005 = vmatpush.msra.mxu0 %v825
    %1006 = vmatpush.msra.mxu0 %v824
    %1007 = vmatpush.msra.mxu0 %v823
    %1008 = vmatpush.msra.mxu0 %v822
    %1009 = vmatpush.msra.mxu0 %v821
    %1010 = vmatpush.msra.mxu0 %v820
    %1011 = vmatpush.msra.mxu0 %v819
    %1012 = vmatmul.f32.gmra.mxu0 %v973
    %v1013 = vpop.f32.mrf.mxu0
    %v1014 = vadd.f32 %v994, %v1013
    %1015 = vdwg.mxu0
    %1016 = vmatpush.msra.mxu0 %v850
    %1017 = vmatpush.msra.mxu0 %v849
    %1018 = vmatpush.msra.mxu0 %v848
    %1019 = vmatpush.msra.mxu0 %v847
    %1020 = vmatpush.msra.mxu0 %v846
    %1021 = vmatpush.msra.mxu0 %v845
    %1022 = vmatpush.msra.mxu0 %v844
    %1023 = vmatpush.msra.mxu0 %v843
    %1024 = vmatpush.msra.mxu0 %v842
    %1025 = vmatpush.msra.mxu0 %v841
    %1026 = vmatpush.msra.mxu0 %v840
    %1027 = vmatpush.msra.mxu0 %v839
    %1028 = vmatpush.msra.mxu0 %v838
    %1029 = vmatpush.msra.mxu0 %v837
    %1030 = vmatpush.msra.mxu0 %v836
    %1031 = vmatpush.msra.mxu0 %v835
    %1032 = vmatmul.f32.gmra.mxu0 %v974
    %v1033 = vpop.f32.mrf.mxu0
    %v1034 = vadd.f32 %v1014, %v1033
    %1035 = vdwg.mxu0
    %1036 = vmatpush.msra.mxu0 %v866
    %1037 = vmatpush.msra.mxu0 %v865
    %1038 = vmatpush.msra.mxu0 %v864
    %1039 = vmatpush.msra.mxu0 %v863
    %1040 = vmatpush.msra.mxu0 %v862
    %1041 = vmatpush.msra.mxu0 %v861
    %1042 = vmatpush.msra.mxu0 %v860
    %1043 = vmatpush.msra.mxu0 %v859
    %1044 = vmatpush.msra.mxu0 %v858
    %1045 = vmatpush.msra.mxu0 %v857
    %1046 = vmatpush.msra.mxu0 %v856
    %1047 = vmatpush.msra.mxu0 %v855
    %1048 = vmatpush.msra.mxu0 %v854
    %1049 = vmatpush.msra.mxu0 %v853
    %1050 = vmatpush.msra.mxu0 %v852
    %1051 = vmatpush.msra.mxu0 %v851
    %1052 = vmatmul.f32.gmra.mxu0 %v975
    %v1053 = vpop.f32.mrf.mxu0
    %v1054 = vadd.f32 %v1034, %v1053
    %1055 = vdwg.mxu0
    %v1056 = vsel %vm947, %v1054, 0.0
    %1057 = vadd.xlane.f32.xlu0 %v1056
    %v1058 = vpop.xlane.xlu0 %1057
    %v1059 = vrot.slane %v1058, 4
    %v1060 = vadd.f32 %v1058, %v1059
    %v1061 = vrot.slane %v1060, 2
    %v1062 = vadd.f32 %v1060, %v1061
    %v1063 = vrot.slane %v1062, 1
    %v1064 = vadd.f32 %v1062, %v1063
    %s1065 = vtos %v1064
    %v1066 = vrcp.pop 2.0
    %v1067 = vmul.f32 2.0, %v1066
    %v1068 = vsub.f32 1.0, %v1067
    %v1069 = vmul.f32 %v1066, %v1068
    %v1070 = vadd.f32 %v1066, %v1069
    %vm1071 = vweird.f32 %v1066
    %v1072 = vsel %vm1071, %v1066, %v1070
    %s1073 = vtos %v1072
    %s1074 = smul.f32 %s1065, %s1073
    %s1075 = sadd.f32 %s1074, 1e-05
    %v1076 = vstv %s1075
    %v1077 = vrsqrt.pop %v1076
    %v1078 = vmul.f32 %v1077, %v1076
    %v1079 = vmul.f32 %v1078, %v1077
    %v1080 = vmul.f32 0.5, %v1079
    %v1081 = vsub.f32 1.5, %v1080
    %v1082 = vmul.f32 %v1077, %v1081
    %vm1083 = vweird.f32 %v1076
    %vm1084 = vweird.f32 %v1077
    %vm1085 = vmor %vm1083, %vm1084
    %v1086 = vsel %vm1085, %v1077, %v1082
    %s1087 = vtos %v1086
    %v1088 = vstv %s1087
    %v1089 = vmul.f32 %v968, %v1088
    %v1090 = vmul.f32 %v969, %v1088
    %v1091 = vmul.f32 %v970, %v1088
    %v1092 = vmul.f32 %v971, %v1088
    %v1093 = vsub.f32 0.0, %v1089
    %v1094 = vsub.f32 0.0, %v1090
    %v1095 = vsub.f32 0.0, %v1091
    %v1096 = vsub.f32 0.0, %v1092
    %v1097 = vmul.f32 %v1093, 1.442695
    %v1098 = vpow.pop %v1097
    %v1099 = vmul.f32 %v1094, 1.442695
    %v1100 = vpow.pop %v1099
    %v1101 = vmul.f32 %v1095, 1.442695
    %v1102 = vpow.pop %v1101
    %v1103 = vmul.f32 %v1096, 1.442695
    %v1104 = vpow.pop %v1103
    %v1105 = vadd.f32 %v1098, 1.0
    %v1106 = vadd.f32 %v1100, 1.0
    %v1107 = vadd.f32 %v1102, 1.0
    %v1108 = vadd.f32 %v1104, 1.0
    %v1109 = vrcp.pop %v1105
    %v1110 = vrcp.pop %v1106
    %v1111 = vrcp.pop %v1107
    %v1112 = vrcp.pop %v1108
    %v1113 = vmul.f32 %v1109, 1.442695
    %v1114 = vpow.pop %v1113
    %v1115 = vmul.f32 %v1110, 1.442695
    %v1116 = vpow.pop %v1115
    %v1117 = vmul.f32 %v1111, 1.442695
    %v1118 = vpow.pop %v1117
    %v1119 = vmul.f32 %v1112, 1.442695
    %v1120 = vpow.pop %v1119
    %v1121 = vld [vmem:[%s0] sm:$0xff]
    %v1122 = vld [vmem:[%s0 + $0x8] sm:$0xff]
    %v1123 = vld [vmem:[%s0 + $0x10] sm:$0xff]
    %v1124 = vld [vmem:[%s0 + $0x18] sm:$0xff]
    %v1125 = vld [vmem:[%s0 + $0x20] sm:$0xff]
    %v1126 = vld [vmem:[%s0 + $0x28] sm:$0xff]
    %v1127 = vld [vmem:[%s0 + $0x30] sm:$0xff]
    %v1128 = vld [vmem:[%s0 + $0x38] sm:$0xff]
    %v1129 = vld [vmem:[%s0 + $0x40] sm:$0xff]
    %v1130 = vld [vmem:[%s0 + $0x48] sm:$0xff]
    %v1131 = vld [vmem:[%s0 + $0x50] sm:$0xff]
    %v1132 = vld [vmem:[%s0 + $0x58] sm:$0xff]
    %v1133 = vld [vmem:[%s0 + $0x60] sm:$0xff]
    %v1134 = vld [vmem:[%s0 + $0x68] sm:$0xff]
    %v1135 = vld [vmem:[%s0 + $0x70] sm:$0xff]
    %v1136 = vld [vmem:[%s0 + $0x78] sm:$0xff]
    %1137 = vmatpush.msra.mxu0 %v818
    %1138 = vmatpush.msra.mxu0 %v817
    %1139 = vmatpush.msra.mxu0 %v816
    %1140 = vmatpush.msra.mxu0 %v815
    %1141 = vmatpush.msra.mxu0 %v814
    %1142 = vmatpush.msra.mxu0 %v813
    %1143 = vmatpush.msra.mxu0 %v812
    %1144 = vmatpush.msra.mxu0 %v811
    %1145 = vmatpush.msra.mxu0 %v810
    %1146 = vmatpush.msra.mxu0 %v809
    %1147 = vmatpush.msra.mxu0 %v808
    %1148 = vmatpush.msra.mxu0 %v807
    %1149 = vmatpush.msra.mxu0 %v806
    %1150 = vmatpush.msra.mxu0 %v805
    %1151 = vmatpush.msra.mxu0 %v804
    %1152 = vmatpush.msra.mxu0 %v803
    %1153 = vmatmul.f32.gmra.mxu0 %v1121
    %v1154 = vpop.f32.mrf.mxu0
    %v1155 = vadd.f32 0.0, %v1154
    %1156 = vmatmul.f32.gmra.mxu0 %v1125
    %v1157 = vpop.f32.mrf.mxu0
    %v1158 = vadd.f32 0.0, %v1157
    %1159 = vmatmul.f32.gmra.mxu0 %v1129
    %v1160 = vpop.f32.mrf.mxu0
    %v1161 = vadd.f32 0.0, %v1160
    %1162 = vmatmul.f32.gmra.mxu0 %v1133
    %v1163 = vpop.f32.mrf.mxu0
    %v1164 = vadd.f32 0.0, %v1163
    %1165 = vdwg.mxu0
    %1166 = vmatpush.msra.mxu0 %v834
    %1167 = vmatpush.msra.mxu0 %v833
    %1168 = vmatpush.msra.mxu0 %v832
    %1169 = vmatpush.msra.mxu0 %v831
    %1170 = vmatpush.msra.mxu0 %v830
    %1171 = vmatpush.msra.mxu0 %v829
    %1172 = vmatpush.msra.mxu0 %v828
    %1173 = vmatpush.msra.mxu0 %v827
    %1174 = vmatpush.msra.mxu0 %v826
    %1175 = vmatpush.msra.mxu0 %v825
    %1176 = vmatpush.msra.mxu0 %v824
    %1177 = vmatpush.msra.mxu0 %v823
    %1178 = vmatpush.msra.mxu0 %v822
    %1179 = vmatpush.msra.mxu0 %v821
    %1180 = vmatpush.msra.mxu0 %v820
    %1181 = vmatpush.msra.mxu0 %v819
    %1182 = vmatmul.f32.gmra.mxu0 %v1122
    %v1183 = vpop.f32.mrf.mxu0
    %v1184 = vadd.f32 %v1155, %v1183
    %1185 = vmatmul.f32.gmra.mxu0 %v1126
    %v1186 = vpop.f32.mrf.mxu0
    %v1187 = vadd.f32 %v1158, %v1186
    %1188 = vmatmul.f32.gmra.mxu0 %v1130
    %v1189 = vpop.f32.mrf.mxu0
    %v1190 = vadd.f32 %v1161, %v1189
    %1191 = vmatmul.f32.gmra.mxu0 %v1134
    %v1192 = vpop.f32.mrf.mxu0
    %v1193 = vadd.f32 %v1164, %v1192
    %1194 = vdwg.mxu0
    %1195 = vmatpush.msra.mxu0 %v850
    %1196 = vmatpush.msra.mxu0 %v849
    %1197 = vmatpush.msra.mxu0 %v848
    %1198 = vmatpush.msra.mxu0 %v847
    %1199 = vmatpush.msra.mxu0 %v846
    %1200 = vmatpush.msra.mxu0 %v845
    %1201 = vmatpush.msra.mxu0 %v844
    %1202 = vmatpush.msra.mxu0 %v843
    %1203 = vmatpush.msra.mxu0 %v842
    %1204 = vmatpush.msra.mxu0 %v841
    %1205 = vmatpush.msra.mxu0 %v840
    %1206 = vmatpush.msra.mxu0 %v839
    %1207 = vmatpush.msra.mxu0 %v838
    %1208 = vmatpush.msra.mxu0 %v837
    %1209 = vmatpush.msra.mxu0 %v836
    %1210 = vmatpush.msra.mxu0 %v835
    %1211 = vmatmul.f32.gmra.mxu0 %v1123
    %v1212 = vpop.f32.mrf.mxu0
    %v1213 = vadd.f32 %v1184, %v1212
    %1214 = vmatmul.f32.gmra.mxu0 %v1127
    %v1215 = vpop.f32.mrf.mxu0
    %v1216 = vadd.f32 %v1187, %v1215
    %1217 = vmatmul.f32.gmra.mxu0 %v1131
    %v1218 = vpop.f32.mrf.mxu0
    %v1219 = vadd.f32 %v1190, %v1218
    %1220 = vmatmul.f32.gmra.mxu0 %v1135
    %v1221 = vpop.f32.mrf.mxu0
    %v1222 = vadd.f32 %v1193, %v1221
    %1223 = vdwg.mxu0
    %1224 = vmatpush.msra.mxu0 %v866
    %1225 = vmatpush.msra.mxu0 %v865
    %1226 = vmatpush.msra.mxu0 %v864
    %1227 = vmatpush.msra.mxu0 %v863
    %1228 = vmatpush.msra.mxu0 %v862
    %1229 = vmatpush.msra.mxu0 %v861
    %1230 = vmatpush.msra.mxu0 %v860
    %1231 = vmatpush.msra.mxu0 %v859
    %1232 = vmatpush.msra.mxu0 %v858
    %1233 = vmatpush.msra.mxu0 %v857
    %1234 = vmatpush.msra.mxu0 %v856
    %1235 = vmatpush.msra.mxu0 %v855
    %1236 = vmatpush.msra.mxu0 %v854
    %1237 = vmatpush.msra.mxu0 %v853
    %1238 = vmatpush.msra.mxu0 %v852
    %1239 = vmatpush.msra.mxu0 %v851
    %1240 = vmatmul.f32.gmra.mxu0 %v1124
    %v1241 = vpop.f32.mrf.mxu0
    %v1242 = vadd.f32 %v1213, %v1241
    %1243 = vmatmul.f32.gmra.mxu0 %v1128
    %v1244 = vpop.f32.mrf.mxu0
    %v1245 = vadd.f32 %v1216, %v1244
    %1246 = vmatmul.f32.gmra.mxu0 %v1132
    %v1247 = vpop.f32.mrf.mxu0
    %v1248 = vadd.f32 %v1219, %v1247
    %1249 = vmatmul.f32.gmra.mxu0 %v1136
    %v1250 = vpop.f32.mrf.mxu0
    %v1251 = vadd.f32 %v1222, %v1250
    %1252 = vdwg.mxu0
    %v1253 = vld [vmem:[%s0] sm:$0xff]
    %v1254 = vld [vmem:[%s0 + $0x8] sm:$0xff]
    %v1255 = vld [vmem:[%s0 + $0x20] sm:$0xff]
    %v1256 = vld [vmem:[%s0 + $0x28] sm:$0xff]
    %v1257 = vld [vmem:[%s0 + $0x40] sm:$0xff]
    %v1258 = vld [vmem:[%s0 + $0x48] sm:$0xff]
    %v1259 = vld [vmem:[%s0 + $0x60] sm:$0xff]
    %v1260 = vld [vmem:[%s0 + $0x68] sm:$0xff]
    %v1261 = vmax.f32 %v1253, %v1254
    %1262 = vmax.xlane.f32.xlu0 %v1261
    %v1263 = vpop.xlane.xlu0 %1262
    %v1264 = vmax.f32 %v1255, %v1256
    %1265 = vmax.xlane.f32.xlu0 %v1264
    %v1266 = vpop.xlane.xlu0 %1265
    %v1267 = vmax.f32 %v1257, %v1258
    %1268 = vmax.xlane.f32.xlu0 %v1267
    %v1269 = vpop.xlane.xlu0 %1268
    %v1270 = vmax.f32 %v1259, %v1260
    %1271 = vmax.xlane.f32.xlu0 %v1270
    %v1272 = vpop.xlane.xlu0 %1271
    %v1273 = vmax.f32 %v1123, %v1124
    %1274 = vmax.xlane.f32.xlu0 %v1273
    %v1275 = vpop.xlane.xlu0 %1274
    %v1276 = vmax.f32 %v1127, %v1128
    %1277 = vmax.xlane.f32.xlu0 %v1276
    %v1278 = vpop.xlane.xlu0 %1277
    %v1279 = vmax.f32 %v1131, %v1132
    %1280 = vmax.xlane.f32.xlu0 %v1279
    %v1281 = vpop.xlane.xlu0 %1280
    %v1282 = vmax.f32 %v1135, %v1136
    %1283 = vmax.xlane.f32.xlu0 %v1282
    %v1284 = vpop.xlane.xlu0 %1283
    %vm1285 = vcmask 15360
    %v1286 = vsel %vm1285, %v1242, %v1263
    %v1287 = vsel %vm1285, %v1245, %v1266
    %v1288 = vsel %vm1285, %v1248, %v1269
    %v1289 = vsel %vm1285, %v1251, %v1272
    %vm1290 = vcmask 23552
    %v1291 = vsel %vm1290, %v1286, %v1275
    %v1292 = vsel %vm1290, %v1287, %v1278
    %v1293 = vsel %vm1290, %v1288, %v1281
    %v1294 = vsel %vm1290, %v1289, %v1284
    %v1295 = vld [vmem:[%s2] sm:$0xff]
    %v1296 = vld [vmem:[%s3] sm:$0xff]
    %1298 = vset.pattern.permute.xlu0 0
    %1299 = vperm.xlu0 %1298, %v1296
    %v1300 = vpop.permute.xlu0 %1299
    %v1303 = vsel %vm51, %v1295, 0
    %1305 = vmatpush.msra.mxu0 0.0
    %1306 = vmatpush.msra.mxu0 0.0
    %1307 = vmatpush.msra.mxu0 0.0
    %1308 = vmatpush.msra.mxu0 0.0
    %1309 = vmatpush.msra.mxu0 0.0
    %1310 = vmatpush.msra.mxu0 0.0
    %1311 = vmatpush.msra.mxu0 0.0
    %1312 = vmatpush.msra.mxu0 0.0
    %1313 = vmatpush.msra.mxu0 0.0
    %1314 = vmatpush.msra.mxu0 0.0
    %1315 = vmatpush.msra.mxu0 0.0
    %1316 = vmatpush.msra.mxu0 0.0
    %1317 = vmatpush.msra.mxu0 %v1294
    %1318 = vmatpush.msra.mxu0 %v1293
    %1319 = vmatpush.msra.mxu0 %v1292
    %1320 = vmatpush.msra.mxu0 %v1291
    %1321 = vmatmul.f32.gmra.mxu0 %v1303
    %v1322 = vpop.f32.mrf.mxu0
    %v1323 = vadd.f32 %v1300, %v1322
    %1324 = vdwg.mxu0
    %vm1325 = vcmp.ge.f32.partialorder %v1323, 0.0
    %v1326 = vmul.f32 %v1323, 0.15
    %v1327 = vsel %vm1325, %v1323, %v1326
    %v1328 = vld [vmem:[%s4] sm:$0xff]
    %v1329 = vld [vmem:[%s4 + $0x8] sm:$0xff]
    %v1330 = vld [vmem:[%s4 + $0x10] sm:$0xff]
    %v1331 = vld [vmem:[%s4 + $0x18] sm:$0xff]
    %v1332 = vld [vmem:[%s5] sm:$0xff]
    %v1333 = vld [vmem:[%s5 + $0x8] sm:$0xff]
    %v1334 = vld [vmem:[%s5 + $0x10] sm:$0xff]
    %v1335 = vld [vmem:[%s5 + $0x18] sm:$0xff]
    %1337 = vset.pattern.permute.xlu0 0
    %1338 = vperm.xlu0 %1337, %v1332
    %v1339 = vpop.permute.xlu0 %1338
    %1342 = vset.pattern.permute.xlu0 0
    %1343 = vperm.xlu0 %1342, %v1333
    %v1344 = vpop.permute.xlu0 %1343
    %1347 = vset.pattern.permute.xlu0 0
    %1348 = vperm.xlu0 %1347, %v1334
    %v1349 = vpop.permute.xlu0 %1348
    %1352 = vset.pattern.permute.xlu0 0
    %1353 = vperm.xlu0 %1352, %v1335
    %v1354 = vpop.permute.xlu0 %1353
    %vm1356 = vcmask 64512
    %v1358 = vsel %vm1356, %v1328, 0
    %v1361 = vsel %vm1356, %v1329, 0
    %v1364 = vsel %vm1356, %v1330, 0
    %v1367 = vsel %vm1356, %v1331, 0
    %1369 = vmatpush.msra.mxu0 0.0
    %1370 = vmatpush.msra.mxu0 0.0
    %1371 = vmatpush.msra.mxu0 0.0
    %1372 = vmatpush.msra.mxu0 0.0
    %1373 = vmatpush.msra.mxu0 0.0
    %1374 = vmatpush.msra.mxu0 0.0
    %1375 = vmatpush.msra.mxu0 0.0
    %1376 = vmatpush.msra.mxu0 0.0
    %1377 = vmatpush.msra.mxu0 0.0
    %1378 = vmatpush.msra.mxu0 0.0
    %1379 = vmatpush.msra.mxu0 0.0
    %1380 = vmatpush.msra.mxu0 0.0
    %1381 = vmatpush.msra.mxu0 0.0
    %1382 = vmatpush.msra.mxu0 0.0
    %1383 = vmatpush.msra.mxu0 0.0
    %1384 = vmatpush.msra.mxu0 %v1327
    %1385 = vmatmul.f32.gmra.mxu0 %v1358
    %v1386 = vpop.f32.mrf.mxu0
    %v1387 = vadd.f32 %v1339, %v1386
    %1388 = vmatmul.f32.gmra.mxu0 %v1361
    %v1389 = vpop.f32.mrf.mxu0
    %v1390 = vadd.f32 %v1344, %v1389
    %1391 = vmatmul.f32.gmra.mxu0 %v1364
    %v1392 = vpop.f32.mrf.mxu0
    %v1393 = vadd.f32 %v1349, %v1392
    %1394 = vmatmul.f32.gmra.mxu0 %v1367
    %v1395 = vpop.f32.mrf.mxu0
    %v1396 = vadd.f32 %v1354, %v1395
    %1397 = vdwg.mxu0
    %1402 = vrot.lane.b32.xlu0 %v1387, 126
    %v1403 = vpop.permute.xlu0 %1402
    %1404 = vrot.lane.b32.xlu0 %v1390, 126
    %v1405 = vpop.permute.xlu0 %1404
    %1406 = vrot.lane.b32.xlu0 %v1393, 126
    %v1407 = vpop.permute.xlu0 %1406
    %1408 = vrot.lane.b32.xlu0 %v1396, 126
    %v1409 = vpop.permute.xlu0 %1408
    %v1414 = vadd.f32 %v1387, %v1403
    %v1415 = vadd.f32 %v1390, %v1405
    %v1416 = vadd.f32 %v1393, %v1407
    %v1417 = vadd.f32 %v1396, %v1409
    %v1418 = vsub.f32 0.0, %v1414
    %v1419 = vsub.f32 0.0, %v1415
    %v1420 = vsub.f32 0.0, %v1416
    %v1421 = vsub.f32 0.0, %v1417
    %v1422 = vmul.f32 %v1418, 1.442695
    %v1423 = vpow.pop %v1422
    %v1424 = vmul.f32 %v1419, 1.442695
    %v1425 = vpow.pop %v1424
    %v1426 = vmul.f32 %v1420, 1.442695
    %v1427 = vpow.pop %v1426
    %v1428 = vmul.f32 %v1421, 1.442695
    %v1429 = vpow.pop %v1428
    %v1430 = vadd.f32 %v1423, 1.0
    %v1431 = vadd.f32 %v1425, 1.0
    %v1432 = vadd.f32 %v1427, 1.0
    %v1433 = vadd.f32 %v1429, 1.0
    %v1434 = vrcp.pop %v1430
    %v1435 = vrcp.pop %v1431
    %v1436 = vrcp.pop %v1432
    %v1437 = vrcp.pop %v1433
    %v1438 = vmul.f32 %v1434, 1.442695
    %v1439 = vpow.pop %v1438
    %v1440 = vmul.f32 %v1435, 1.442695
    %v1441 = vpow.pop %v1440
    %v1442 = vmul.f32 %v1436, 1.442695
    %v1443 = vpow.pop %v1442
    %v1444 = vmul.f32 %v1437, 1.442695
    %v1445 = vpow.pop %v1444
    %v1446 = vadd.f32 %v1114, 1.0
    %v1447 = vadd.f32 %v1116, 1.0
    %v1448 = vadd.f32 %v1118, 1.0
    %v1449 = vadd.f32 %v1120, 1.0
    %v1450 = vperm.slane %v1446, 0
    %v1451 = vperm.slane %v1447, 0
    %1453 = vset.pattern.permute.xlu0 0
    %1454 = vperm.xlu0 %1453, %v1439
    %v1455 = vpop.permute.xlu0 %1454
    %1458 = vset.pattern.permute.xlu0 0
    %1459 = vperm.xlu0 %1458, %v1441
    %v1460 = vpop.permute.xlu0 %1459
    %1463 = vset.pattern.permute.xlu0 0
    %1464 = vperm.xlu0 %1463, %v1443
    %v1465 = vpop.permute.xlu0 %1464
    %1468 = vset.pattern.permute.xlu0 0
    %1469 = vperm.xlu0 %1468, %v1445
    %v1470 = vpop.permute.xlu0 %1469
    %v1472 = vadd.f32 %v1450, %v1455
    %v1473 = vadd.f32 %v1451, %v1455
    %v1474 = vadd.f32 %v1450, %v1460
    %v1475 = vadd.f32 %v1451, %v1460
    %v1476 = vadd.f32 %v1450, %v1465
    %v1477 = vadd.f32 %v1451, %v1465
    %v1478 = vadd.f32 %v1450, %v1470
    %v1479 = vadd.f32 %v1451, %v1470
    %v1480 = vmul.f32 %v1253, %v1472
    %v1481 = vmul.f32 %v1254, %v1473
    %v1482 = vmul.f32 %v1255, %v1474
    %v1483 = vmul.f32 %v1256, %v1475
    %v1484 = vmul.f32 %v1257, %v1476
    %v1485 = vmul.f32 %v1258, %v1477
    %v1486 = vmul.f32 %v1259, %v1478
    %v1487 = vmul.f32 %v1260, %v1479
    %1488 = vst [vmem:[#allocation3] sm:$0xff] %v1480
    %1489 = vst [vmem:[#allocation3 + $0x8] sm:$0xff] %v1481
    %1490 = vst [vmem:[#allocation3 + $0x20] sm:$0xff] %v1482
    %1491 = vst [vmem:[#allocation3 + $0x28] sm:$0xff] %v1483
    %1492 = vst [vmem:[#allocation3 + $0x40] sm:$0xff] %v1484
    %1493 = vst [vmem:[#allocation3 + $0x48] sm:$0xff] %v1485
    %1494 = vst [vmem:[#allocation3 + $0x60] sm:$0xff] %v1486
    %1495 = vst [vmem:[#allocation3 + $0x68] sm:$0xff] %v1487
    %v1496 = vld [vmem:[%s0 + $0x10] sm:$0xff]
    %v1497 = vld [vmem:[%s0 + $0x18] sm:$0xff]
    %v1498 = vld [vmem:[%s0 + $0x30] sm:$0xff]
    %v1499 = vld [vmem:[%s0 + $0x38] sm:$0xff]
    %v1500 = vld [vmem:[%s0 + $0x50] sm:$0xff]
    %v1501 = vld [vmem:[%s0 + $0x58] sm:$0xff]
    %v1502 = vld [vmem:[%s0 + $0x70] sm:$0xff]
    %v1503 = vld [vmem:[%s0 + $0x78] sm:$0xff]
    %v1504 = vperm.slane %v1448, 0
    %v1505 = vperm.slane %v1449, 0
    %1506 = vset.pattern.permute.xlu0 1
    %1507 = vperm.xlu0 %1506, %v1439
    %v1508 = vpop.permute.xlu0 %1507
    %1510 = vset.pattern.permute.xlu0 1
    %1511 = vperm.xlu0 %1510, %v1441
    %v1512 = vpop.permute.xlu0 %1511
    %1514 = vset.pattern.permute.xlu0 1
    %1515 = vperm.xlu0 %1514, %v1443
    %v1516 = vpop.permute.xlu0 %1515
    %1518 = vset.pattern.permute.xlu0 1
    %1519 = vperm.xlu0 %1518, %v1445
    %v1520 = vpop.permute.xlu0 %1519
    %v1522 = vadd.f32 %v1504, %v1508
    %v1523 = vadd.f32 %v1505, %v1508
    %v1524 = vadd.f32 %v1504, %v1512
    %v1525 = vadd.f32 %v1505, %v1512
    %v1526 = vadd.f32 %v1504, %v1516
    %v1527 = vadd.f32 %v1505, %v1516
    %v1528 = vadd.f32 %v1504, %v1520
    %v1529 = vadd.f32 %v1505, %v1520
    %v1530 = vmul.f32 %v1496, %v1522
    %v1531 = vmul.f32 %v1497, %v1523
    %v1532 = vmul.f32 %v1498, %v1524
    %v1533 = vmul.f32 %v1499, %v1525
    %v1534 = vmul.f32 %v1500, %v1526
    %v1535 = vmul.f32 %v1501, %v1527
    %v1536 = vmul.f32 %v1502, %v1528
    %v1537 = vmul.f32 %v1503, %v1529
    %1538 = vst [vmem:[#allocation3 + $0x10] sm:$0xff] %v1530
    %1539 = vst [vmem:[#allocation3 + $0x18] sm:$0xff] %v1531
    %1540 = vst [vmem:[#allocation3 + $0x30] sm:$0xff] %v1532
    %1541 = vst [vmem:[#allocation3 + $0x38] sm:$0xff] %v1533
    %1542 = vst [vmem:[#allocation3 + $0x50] sm:$0xff] %v1534
    %1543 = vst [vmem:[#allocation3 + $0x58] sm:$0xff] %v1535
    %1544 = vst [vmem:[#allocation3 + $0x70] sm:$0xff] %v1536
    %1545 = vst [vmem:[#allocation3 + $0x78] sm:$0xff] %v1537
    // Predicated region
    $region38: #{tpu_custom_call.1} parent=1 // pred_check
      _
    $region39: #{tpu_custom_call.1} parent=1 // pred_check_branch
      %1547 = sbr.rel (0) target = $region41
    $region40: #{tpu_custom_call.1} parent=1 // pred_region
      %1549 = vsyncadd [#allocation4], 0
      %s1550 = sshll.u32 [#allocation3], 4
      %s1551 = int_to_ptr.vmem [resolvable:$true] %s1550
      %s1552 = sshll.u32 %s9, 4
      %s1553 = int_to_ptr.hbm [resolvable:$true] %s1552
      %1558 = dma.vmem_to_hbm [thread:$0]  %s1551, 2048, %s1553, [#allocation4], 512, 512, 32
    $region41: #{tpu_custom_call.1} parent=1 // pred_fallthru
      _
    // Predicated region
    $region42: #{tpu_custom_call.1} parent=1 // pred_check
      _
    $region43: #{tpu_custom_call.1} parent=1 // pred_check_branch
      %1560 = sbr.rel (0) target = $region45
    $region44: #{tpu_custom_call.1} parent=1 // pred_region
      %1562 = dma.done [#allocation4], 2048
    $region45: #{tpu_custom_call.1} parent=1 // pred_fallthru
      _
    %1563 = vsyncpa [#allocation4], 1

</llo_original>
